<compile_context>
chip_gen: v7x
topology: tpu7x:2x2x1
jax: 0.10.0
libtpu: 0.0.40
codegen_flags: <defaults>
</compile_context>

<pallas_src>
import jax
import jax.numpy as jnp
from jax import lax
from jax.experimental import pallas as pl
from jax.experimental.pallas import tpu as pltpu

NUM_CLUSTERS = 9
K_PAD = 16          # clusters padded to a sublane-friendly size inside the kernel
DIM = 512           # descriptor dim (output of encoder_change)
D_IN = 1024         # input descriptor dim (encoder_change input)
ALPHA = 10.0
EPS = 1e-12         # F.normalize eps


def netvlad_kernel(x_ref, w_enc_ref, b_enc_ref, cent_ref, cent2a_ref, conv_b_ref,
                   out_ref):
    B, T, _ = x_ref.shape                                     # static block shape

    # ---- input descriptors (bf16 at the boundary) ----------------------------
    x = x_ref[...].reshape(B * T, D_IN)                       # (R, 1024) bf16

    # per-descriptor sum of squares in f32 (for the deferred L2-norm scale)
    x32 = x.astype(jnp.float32)
    ssq = jnp.sum(x32 * x32, axis=-1, keepdims=True)          # (R, 1)
    inv_norm = lax.rsqrt(jnp.maximum(ssq, EPS * EPS))         # == 1 / max(||x||, EPS)

    # ---- encoder_change: Linear 1024 -> 512 (bf16 MXU, f32 accumulate) -------
    # L2-norm scale is applied AFTER the matmul (exact: matmul is linear in a
    # per-row scalar), so no normalized (R,1024) intermediate is materialized.
    xc_raw = jnp.dot(x, w_enc_ref[...],
                     preferred_element_type=jnp.float32)      # (R, 512) f32
    xc = xc_raw * inv_norm + b_enc_ref[...]                   # (R, 512) f32

    # ---- soft assignment: xc @ (2*alpha*C)^T + bias ---------------------------
    # bias carries -1e30 for the padded clusters and is added in f32.
    logits = lax.dot_general(
        xc.astype(jnp.bfloat16), cent2a_ref[...],
        (((1,), (1,)), ((), ())),
        preferred_element_type=jnp.float32) + conv_b_ref[...]  # (R, K_PAD)

    # softmax over clusters (padded clusters -> exp underflows to exactly 0)
    m = jnp.max(logits, axis=-1, keepdims=True)
    e = jnp.exp(logits - m)
    a = e * pl.reciprocal(jnp.sum(e, axis=-1, keepdims=True), approx=True)  # (R, K_PAD)

    # ---- VLAD aggregation (per batch element) ---------------------------------
    # vlad[b,k,:] = sum_t a[b,t,k] * (xc[b,t,:] - c[k,:])
    #            = (a^T @ xc)[b,k,:] - (sum_t a[b,t,k]) * c[k,:]
    a3 = a.reshape(B, T, K_PAD)                               # f32
    xc3 = xc.reshape(B, T, DIM)                               # f32
    s = jnp.sum(a3, axis=1)                                   # (B, K_PAD) f32
    agg = jnp.einsum('btk,btd->bkd',
                     a3.astype(jnp.bfloat16), xc3.astype(jnp.bfloat16),
                     preferred_element_type=jnp.float32)      # (B, K_PAD, DIM)
    vlad = agg - s[:, :, None] * cent_ref[...][None, :, :]    # (B, K_PAD, DIM)

    # intra-normalization (F.normalize over dim=2)
    vssq = jnp.sum(vlad * vlad, axis=-1, keepdims=True)
    vlad = vlad * lax.rsqrt(jnp.maximum(vssq, EPS * EPS))

    # ---- fused output: rows [0:9] = vlad, rows [9:9+T] = x_flatten^T (== xc) --
    out_ref[:, :NUM_CLUSTERS, :] = vlad[:, :NUM_CLUSTERS, :]
    out_ref[:, NUM_CLUSTERS:, :] = xc3


def _vmem_config():
    """Return (vmem_limit_bytes, max_rows) sized for the running chip's VMEM."""
    phys = 64 * 1024 * 1024                     # conservative default (v7x: 64 MiB/TC)
    try:
        info = pltpu.get_tpu_info()
        cap = getattr(info, "vmem_capacity_bytes", None)
        if cap:
            phys = int(cap)
    except Exception:
        pass
    if phys >= 96 * 1024 * 1024:                # v5e / v6e: 128 MiB physical VMEM
        return 96 * 1024 * 1024, 2048
    return 40 * 1024 * 1024, 1024               # v7x: stay well inside 64 MiB


def _pick_batch_block(n, t, target_rows=512, max_rows=1024):
    """Largest per-step batch block (divisor of n) whose row count fits the VMEM
    budget; among blocks reaching `target_rows` rows prefer the smallest that
    still leaves >=2 grid steps (keeps both v7x TensorCores busy).  The fallback
    also prefers >=2 grid steps."""
    divs = [d for d in range(1, n + 1) if n % d == 0 and d * t <= max_rows]
    if not divs:
        return 1
    reach = [d for d in divs if d * t >= target_rows]
    if reach:
        multi = [d for d in reach if n // d >= 2]
        return min(multi) if multi else min(reach)
    multi = [d for d in divs if n // d >= 2]
    return max(multi) if multi else max(divs)


def netvlad_forward(x, w_enc_t_bf16, b_enc_2d, cent_pad, cent2a_pad_bf16, conv_b_pad):
    """x: (N, T, D_IN) f32 or bf16. Returns (output (N, 9+T, 512) f32, None)."""
    N, T, _ = x.shape
    x_bf16 = x.astype(jnp.bfloat16)             # cast once; halves the input HBM stream

    vmem_limit, max_rows = _vmem_config()
    B_blk = _pick_batch_block(N, T, target_rows=512, max_rows=max_rows)
    grid = (N // B_blk,)

    out = pl.pallas_call(
        netvlad_kernel,
        out_shape=jax.ShapeDtypeStruct((N, NUM_CLUSTERS + T, DIM), jnp.float32),
        grid_spec=pltpu.PrefetchScalarGridSpec(
            num_scalar_prefetch=0,
            grid=grid,
            in_specs=[
                pl.BlockSpec((B_blk, T, D_IN), lambda n: (n, 0, 0)),  # x block (bf16)
                pl.BlockSpec((D_IN, DIM), lambda n: (0, 0)),          # encoder W^T (bf16)
                pl.BlockSpec((1, DIM), lambda n: (0, 0)),             # encoder bias (f32)
                pl.BlockSpec((K_PAD, DIM), lambda n: (0, 0)),         # centroids (f32)
                pl.BlockSpec((K_PAD, DIM), lambda n: (0, 0)),         # 2*alpha*centroids (bf16)
                pl.BlockSpec((1, K_PAD), lambda n: (0, 0)),           # conv bias (f32, -1e30 pad)
            ],
            out_specs=pl.BlockSpec((B_blk, NUM_CLUSTERS + T, DIM),
                                   lambda n: (n, 0, 0)),
        ),
        compiler_params=pltpu.CompilerParams(
            dimension_semantics=("parallel",),
            vmem_limit_bytes=vmem_limit,
        ),
    )(x_bf16, w_enc_t_bf16, b_enc_2d, cent_pad, cent2a_pad_bf16, conv_b_pad)

    attention_mask = None
    return out, attention_mask


def _reference(x, w_enc, b_enc, centroids, conv_bias):
    """Pure-JAX f32 reference mirroring the PyTorch module."""
    hp = lax.Precision.HIGHEST
    nrm = jnp.sqrt(jnp.sum(x * x, axis=-1, keepdims=True))
    xn = x / jnp.maximum(nrm, EPS)
    xc = jnp.einsum('ntc,dc->ntd', xn, w_enc, precision=hp) + b_enc        # (N,T,512)
    logits = jnp.einsum('ntd,kd->ntk', xc, 2.0 * ALPHA * centroids,
                        precision=hp) + conv_bias                          # (N,T,9)
    a = jax.nn.softmax(logits, axis=-1)
    agg = jnp.einsum('ntk,ntd->nkd', a, xc, precision=hp)
    vlad = agg - jnp.sum(a, axis=1)[..., None] * centroids[None]
    vnrm = jnp.sqrt(jnp.sum(vlad * vlad, axis=-1, keepdims=True))
    vlad = vlad / jnp.maximum(vnrm, EPS)
    return jnp.concatenate([vlad, xc], axis=1)


if __name__ == "__main__":
    key = jax.random.PRNGKey(0)
    k_x, k_c, k_w, k_b = jax.random.split(key, 4)

    # Small, module-consistent shapes: N=2, T=8, input dim fixed at 1024 by Linear(1024, 512).
    N, T = 2, 8
    x = jax.random.normal(k_x, (N, T, D_IN), dtype=jnp.float32)

    # ---- deterministic synthetic parameters (shapes match the PyTorch module) ----
    centroids = 0.1 * jax.random.uniform(k_c, (NUM_CLUSTERS, DIM), dtype=jnp.float32)
    bound = 1.0 / (D_IN ** 0.5)
    w_enc = jax.random.uniform(k_w, (DIM, D_IN), minval=-bound, maxval=bound,
                               dtype=jnp.float32)             # nn.Linear weight (out, in)
    b_enc = jax.random.uniform(k_b, (DIM,), minval=-bound, maxval=bound,
                               dtype=jnp.float32)

    # _init_params: conv.weight = 2*alpha*centroids (1x1), conv.bias = -alpha*||centroids||
    conv_bias = -ALPHA * jnp.sqrt(jnp.sum(centroids * centroids, axis=1))   # (9,)

    # pad cluster axis to K_PAD (zero centroid rows + -1e30 bias => softmax weight == 0)
    cent_pad = jnp.zeros((K_PAD, DIM), jnp.float32).at[:NUM_CLUSTERS].set(centroids)
    cent2a_pad = (2.0 * ALPHA * cent_pad).astype(jnp.bfloat16)   # precomputed, bf16 MXU operand
    conv_b_pad = jnp.full((1, K_PAD), -1e30, jnp.float32).at[0, :NUM_CLUSTERS].set(conv_bias)

    output, attention_mask = netvlad_forward(
        x, w_enc.T.astype(jnp.bfloat16), b_enc[None, :], cent_pad, cent2a_pad, conv_b_pad)
    output = jax.block_until_ready(output)

    assert output.shape == (N, NUM_CLUSTERS + T, DIM)
    assert output.dtype == jnp.float32
    assert attention_mask is None

    # relaxed tolerance check (bf16 inputs / MXU operands vs f32 reference)
    ref = _reference(x, w_enc, b_enc, centroids, conv_bias)
    rel_err = float(jnp.linalg.norm(output - ref) / jnp.linalg.norm(ref))
    assert rel_err < 3e-2, f"kernel vs reference relative error {rel_err:.4f}"

    print("KERNEL_OK")
</pallas_src>

<mosaic_0001>
module attributes {stable_mosaic.version = 11 : i64} {
  func.func @netvlad_kernel(%arg0: i32, %arg1: memref<1x8x1024xbf16, #tpu.memory_space<vmem>>, %arg2: memref<1024x512xbf16, #tpu.memory_space<vmem>>, %arg3: memref<1x512xf32, #tpu.memory_space<vmem>>, %arg4: memref<16x512xf32, #tpu.memory_space<vmem>>, %arg5: memref<16x512xbf16, #tpu.memory_space<vmem>>, %arg6: memref<1x16xf32, #tpu.memory_space<vmem>>, %arg7: memref<1x17x512xf32, #tpu.memory_space<vmem>>) attributes {dimension_semantics = [#tpu.dimension_semantics<parallel>], iteration_bounds = array<i64: 2>, scalar_prefetch = 0 : i64, scratch_operands = 0 : i64, tpu.core_type = #tpu.core_type<tc>, window_params = [{transform_indices = @transform_0, window_bounds = array<i64: 1, 8, 1024>}, {pipeline_mode = #tpu.pipeline_mode<synchronous>, transform_indices = @transform_1, window_bounds = array<i64: 1024, 512>}, {pipeline_mode = #tpu.pipeline_mode<synchronous>, transform_indices = @transform_2, window_bounds = array<i64: 1, 512>}, {pipeline_mode = #tpu.pipeline_mode<synchronous>, transform_indices = @transform_3, window_bounds = array<i64: 16, 512>}, {pipeline_mode = #tpu.pipeline_mode<synchronous>, transform_indices = @transform_4, window_bounds = array<i64: 16, 512>}, {pipeline_mode = #tpu.pipeline_mode<synchronous>, transform_indices = @transform_5, window_bounds = array<i64: 1, 16>}, {transform_indices = @transform_6, window_bounds = array<i64: 1, 17, 512>}]} {
    %c0 = arith.constant 0 : index
    %c0_0 = arith.constant 0 : index
    %c0_1 = arith.constant 0 : index
    %0 = vector.load %arg1[%c0, %c0_0, %c0_1] : memref<1x8x1024xbf16, #tpu.memory_space<vmem>>, vector<1x8x1024xbf16>
    %1 = vector.shape_cast %0 : vector<1x8x1024xbf16> to vector<8x1024xbf16>
    %2 = arith.extf %1 : vector<8x1024xbf16> to vector<8x1024xf32>
    %3 = arith.mulf %2, %2 : vector<8x1024xf32>
    %cst = arith.constant dense<0.000000e+00> : vector<8xf32>
    %4 = vector.multi_reduction <add>, %3, %cst [1] : vector<8x1024xf32> to vector<8xf32>
    %5 = vector.shape_cast %4 : vector<8xf32> to vector<8x1xf32>
    %cst_2 = arith.constant 1.000000e-24 : f32
    %6 = vector.broadcast %cst_2 : f32 to vector<8x1xf32>
    %7 = arith.maximumf %5, %6 : vector<8x1xf32>
    %8 = math.rsqrt %7 : vector<8x1xf32>
    %c0_3 = arith.constant 0 : index
    %c0_4 = arith.constant 0 : index
    %9 = vector.load %arg2[%c0_3, %c0_4] : memref<1024x512xbf16, #tpu.memory_space<vmem>>, vector<1024x512xbf16>
    %cst_5 = arith.constant dense<0.000000e+00> : vector<8x512xf32>
    %10 = tpu.matmul %1, %9, %cst_5 {dimension_numbers = #tpu.dot_dimension_numbers<[1], [0], [0], [1], [0, 0, 1, 1], [], []>} : vector<8x1024xbf16>, vector<1024x512xbf16>, vector<8x512xf32> -> vector<8x512xf32>
    %11 = vector.broadcast %8 : vector<8x1xf32> to vector<8x512xf32>
    %12 = arith.mulf %10, %11 : vector<8x512xf32>
    %c0_6 = arith.constant 0 : index
    %c0_7 = arith.constant 0 : index
    %13 = vector.load %arg3[%c0_6, %c0_7] : memref<1x512xf32, #tpu.memory_space<vmem>>, vector<1x512xf32>
    %14 = vector.broadcast %13 : vector<1x512xf32> to vector<8x512xf32>
    %15 = arith.addf %12, %14 : vector<8x512xf32>
    %16 = arith.truncf %15 : vector<8x512xf32> to vector<8x512xbf16>
    %c0_8 = arith.constant 0 : index
    %c0_9 = arith.constant 0 : index
    %17 = vector.load %arg5[%c0_8, %c0_9] : memref<16x512xbf16, #tpu.memory_space<vmem>>, vector<16x512xbf16>
    %cst_10 = arith.constant dense<0.000000e+00> : vector<8x16xf32>
    %18 = tpu.matmul %16, %17, %cst_10 {dimension_numbers = #tpu.dot_dimension_numbers<[1], [1], [0], [0], [0, 0, 1, 0], [], []>} : vector<8x512xbf16>, vector<16x512xbf16>, vector<8x16xf32> -> vector<8x16xf32>
    %c0_11 = arith.constant 0 : index
    %c0_12 = arith.constant 0 : index
    %19 = vector.load %arg6[%c0_11, %c0_12] : memref<1x16xf32, #tpu.memory_space<vmem>>, vector<1x16xf32>
    %20 = vector.broadcast %19 : vector<1x16xf32> to vector<8x16xf32>
    %21 = arith.addf %18, %20 : vector<8x16xf32>
    %cst_13 = arith.constant dense<0xFF800000> : vector<8xf32>
    %22 = vector.multi_reduction <maximumf>, %21, %cst_13 [1] : vector<8x16xf32> to vector<8xf32>
    %23 = vector.shape_cast %22 : vector<8xf32> to vector<8x1xf32>
    %24 = vector.broadcast %23 : vector<8x1xf32> to vector<8x16xf32>
    %25 = arith.subf %21, %24 : vector<8x16xf32>
    %26 = math.exp %25 : vector<8x16xf32>
    %cst_14 = arith.constant dense<0.000000e+00> : vector<8xf32>
    %27 = vector.multi_reduction <add>, %26, %cst_14 [1] : vector<8x16xf32> to vector<8xf32>
    %28 = vector.shape_cast %27 : vector<8xf32> to vector<8x1xf32>
    %29 = tpu.reciprocal %28 {approx = true} : vector<8x1xf32> -> vector<8x1xf32>
    %30 = vector.broadcast %29 : vector<8x1xf32> to vector<8x16xf32>
    %31 = arith.mulf %26, %30 : vector<8x16xf32>
    %32 = vector.shape_cast %31 : vector<8x16xf32> to vector<1x8x16xf32>
    %33 = vector.shape_cast %15 : vector<8x512xf32> to vector<1x8x512xf32>
    %cst_15 = arith.constant dense<0.000000e+00> : vector<1x16xf32>
    %34 = vector.multi_reduction <add>, %32, %cst_15 [1] : vector<1x8x16xf32> to vector<1x16xf32>
    %35 = arith.truncf %32 : vector<1x8x16xf32> to vector<1x8x16xbf16>
    %36 = arith.truncf %33 : vector<1x8x512xf32> to vector<1x8x512xbf16>
    "tpu.trace_start"() <{level = 10 : i32, message = "btk,btd->bkd"}> : () -> ()
    %cst_16 = arith.constant dense<0.000000e+00> : vector<1x16x512xf32>
    %37 = tpu.matmul %35, %36, %cst_16 {dimension_numbers = #tpu.dot_dimension_numbers<[1], [1], [2], [2], [0, 0, 0, 2, 1, 2], [0], [0]>} : vector<1x8x16xbf16>, vector<1x8x512xbf16>, vector<1x16x512xf32> -> vector<1x16x512xf32>
    "tpu.trace_stop"() : () -> ()
    %38 = vector.shape_cast %34 : vector<1x16xf32> to vector<1x16x1xf32>
    %c0_17 = arith.constant 0 : index
    %c0_18 = arith.constant 0 : index
    %39 = vector.load %arg4[%c0_17, %c0_18] : memref<16x512xf32, #tpu.memory_space<vmem>>, vector<16x512xf32>
    %40 = vector.shape_cast %39 : vector<16x512xf32> to vector<1x16x512xf32>
    %41 = vector.broadcast %38 : vector<1x16x1xf32> to vector<1x16x512xf32>
    %42 = arith.mulf %41, %40 : vector<1x16x512xf32>
    %43 = arith.subf %37, %42 : vector<1x16x512xf32>
    %44 = arith.mulf %43, %43 : vector<1x16x512xf32>
    %cst_19 = arith.constant dense<0.000000e+00> : vector<1x16xf32>
    %45 = vector.multi_reduction <add>, %44, %cst_19 [2] : vector<1x16x512xf32> to vector<1x16xf32>
    %46 = vector.shape_cast %45 : vector<1x16xf32> to vector<1x16x1xf32>
    %cst_20 = arith.constant 1.000000e-24 : f32
    %47 = vector.broadcast %cst_20 : f32 to vector<1x16x1xf32>
    %48 = arith.maximumf %46, %47 : vector<1x16x1xf32>
    %49 = math.rsqrt %48 : vector<1x16x1xf32>
    %50 = vector.broadcast %49 : vector<1x16x1xf32> to vector<1x16x512xf32>
    %51 = arith.mulf %43, %50 : vector<1x16x512xf32>
    %52 = vector.extract_strided_slice %51 {offsets = [0, 0, 0], sizes = [1, 9, 512], strides = [1, 1, 1]} : vector<1x16x512xf32> to vector<1x9x512xf32>
    %c0_21 = arith.constant 0 : index
    %c0_22 = arith.constant 0 : index
    %c0_23 = arith.constant 0 : index
    %53 = vector.load %arg7[%c0_21, %c0_22, %c0_23] : memref<1x17x512xf32, #tpu.memory_space<vmem>>, vector<1x9x512xf32>
    tpu.vector_store %arg7[%c0_21, %c0_22, %c0_23], %52 {strides = array<i32>} : memref<1x17x512xf32, #tpu.memory_space<vmem>>, vector<1x9x512xf32>,
    %c0_24 = arith.constant 0 : index
    %c9 = arith.constant 9 : index
    %c0_25 = arith.constant 0 : index
    %54 = vector.load %arg7[%c0_24, %c9, %c0_25] : memref<1x17x512xf32, #tpu.memory_space<vmem>>, vector<1x8x512xf32>
    tpu.vector_store %arg7[%c0_24, %c9, %c0_25], %33 {strides = array<i32>} : memref<1x17x512xf32, #tpu.memory_space<vmem>>, vector<1x8x512xf32>,
    return
  }
  func.func @transform_0(%arg0: i32) -> (i32, i32, i32) {
    %c0_i32 = arith.constant 0 : i32
    %c0_i32_0 = arith.constant 0 : i32
    %c0_i32_1 = arith.constant 0 : i32
    return %arg0, %c0_i32, %c0_i32_0 : i32, i32, i32
  }
  func.func @transform_1(%arg0: i32) -> (i32, i32) {
    %c0_i32 = arith.constant 0 : i32
    %c0_i32_0 = arith.constant 0 : i32
    %c0_i32_1 = arith.constant 0 : i32
    return %c0_i32, %c0_i32_0 : i32, i32
  }
  func.func @transform_2(%arg0: i32) -> (i32, i32) {
    %c0_i32 = arith.constant 0 : i32
    %c0_i32_0 = arith.constant 0 : i32
    %c0_i32_1 = arith.constant 0 : i32
    return %c0_i32, %c0_i32_0 : i32, i32
  }
  func.func @transform_3(%arg0: i32) -> (i32, i32) {
    %c0_i32 = arith.constant 0 : i32
    %c0_i32_0 = arith.constant 0 : i32
    %c0_i32_1 = arith.constant 0 : i32
    return %c0_i32, %c0_i32_0 : i32, i32
  }
  func.func @transform_4(%arg0: i32) -> (i32, i32) {
    %c0_i32 = arith.constant 0 : i32
    %c0_i32_0 = arith.constant 0 : i32
    %c0_i32_1 = arith.constant 0 : i32
    return %c0_i32, %c0_i32_0 : i32, i32
  }
  func.func @transform_5(%arg0: i32) -> (i32, i32) {
    %c0_i32 = arith.constant 0 : i32
    %c0_i32_0 = arith.constant 0 : i32
    %c0_i32_1 = arith.constant 0 : i32
    return %c0_i32, %c0_i32_0 : i32, i32
  }
  func.func @transform_6(%arg0: i32) -> (i32, i32, i32) {
    %c0_i32 = arith.constant 0 : i32
    %c0_i32_0 = arith.constant 0 : i32
    %c0_i32_1 = arith.constant 0 : i32
    return %arg0, %c0_i32, %c0_i32_0 : i32, i32, i32
  }
}

</mosaic_0001>

<llo_original>
// kernel: tpu_custom_call.1
$region0: #{tpu_custom_call.1}
  #allocation0 [shape = 'u32[]', space=smem, size = 0x4, offset = 0x4, fixed_abs, tag = 'smem constant byte address 0x4 - core index']
  #allocation1 [shape = 'u32[144,128]{1,0:T(1,128)}', space=vmem, size = 0x12000, scoped, tag = 'internal scratch']
  %s0 = inlined_call_operand.hbm [shape: bf16[2,8,1024], index: 0, kind: input, shape index: {}]
  %s1 = inlined_call_operand.hbm [shape: bf16[1024,512], index: 1, kind: input, shape index: {}]
  %s2 = inlined_call_operand.vmem [shape: f32[1,512], index: 2, kind: input, shape index: {}]
  %s3 = inlined_call_operand.hbm [shape: f32[16,512], index: 3, kind: input, shape index: {}]
  %s4 = inlined_call_operand.hbm [shape: bf16[16,512], index: 4, kind: input, shape index: {}]
  %s5 = inlined_call_operand.vmem [shape: f32[1,16], index: 5, kind: input, shape index: {}]
  %s6 = inlined_call_operand.vmem [shape: f32[2,17,512], index: 6, kind: output, shape index: {}]
  %s7 = sld [smem:[#allocation0]]
  $region73: #{tpu_custom_call.1} parent=0
    _
  %s9 = ssub.s32 1, %s7
  %s10 = scalar_select 0, %s9, %s7
  $region1: #{tpu_custom_call.1} parent=0
    #allocation2 [shape = 'u8[32768]{0}', space=vmem, size = 0x8000, scoped, tag = 'input window, operand 0']
    #allocation3 [shape = 's32[2]{0}', space=sflag, size = 0x8, scoped, tag = 'scoped memory for tpu_custom_call.1']
    #allocation4 [shape = 'u8[1048576]{0}', space=vmem, size = 0x100000, scoped, tag = 'input window, operand 1, single buffered']
    #allocation5 [shape = 's32[1]{0}', space=sflag, size = 0x4, scoped, tag = 'scoped memory for tpu_custom_call.1']
    #allocation6 [shape = 'u8[32768]{0}', space=vmem, size = 0x8000, scoped, tag = 'input window, operand 3, single buffered']
    #allocation7 [shape = 'u8[16384]{0}', space=vmem, size = 0x4000, scoped, tag = 'input window, operand 4, single buffered']
    #allocation8 [shape = 's32[1]{0}', space=sflag, size = 0x4, scoped, tag = 'scoped memory for tpu_custom_call.1']
    %11 = vsyncpa [#allocation3], 0
    %s12 = scalar_lea.sflag [#allocation3], 1
    %13 = vsyncpa %s12, 0
    %14 = vsyncpa [#allocation5], 0
    %15 = vsyncpa [#allocation8], 0
    loop: start=0, step=1, limit=4
    $region2: #{tpu_custom_call.1} parent=1 // loop_pre_header
      _
    $region3: #{tpu_custom_call.1} parent=1 // loop_header
      %s17 = sphi 0, %s21
      %p18 = scmp.ge.s32.totalorder %s17, 4
      %s27 = sphi 0, %s29
      %s30 = sphi 0, %s27
      %s31 = sphi 0, %s30
      %s47 = sphi 0, %s31
      %s51 = sphi 0, %s51
      %s53 = sphi 0, %s51
      %s54 = sphi 0, %s53
      %s68 = sphi 0, %s54
      %s72 = sphi 0, %s72
      %s74 = sphi 0, %s72
      %s75 = sphi 0, %s74
      %s89 = sphi 0, %s75
      %s93 = sphi 0, %s93
      %s95 = sphi 0, %s93
      %s96 = sphi 0, %s95
      %s110 = sphi 0, %s96
      %s114 = sphi 0, %s114
      %s116 = sphi 0, %s114
      %s117 = sphi 0, %s116
      %s131 = sphi 0, %s117
      %s135 = sphi 0, %s135
      %s137 = sphi 0, %s135
      %s138 = sphi 0, %s137
      %s152 = sphi 0, %s138
      %s158 = sphi 0, %s160
      %s161 = sphi 0, %s158
      %s162 = sphi 0, %s161
      %s178 = sphi 0, %s162
    $region4: #{tpu_custom_call.1} parent=1 // loop_header_branch
      %20 = sbr.rel (%p18) target = $region8
    $region5: #{tpu_custom_call.1} parent=1 // loop_body
      %s22 = ssub.s32 %s17, 1
      %s23 = ssub.s32 %s17, 2
      %s24 = sadd.s32 %s17, 1
      %s25 = ssub.s32 %s17, %s24
      %p26 = scmp.eq.s32.totalorder %s25, 0
      %s28 = sadd.s32 %s27, 1
      %s29 = scalar_select %p26, %s27, %s28
      %p32 = pneg %p26
      %p33 = scmp.eq.s32.totalorder %s17, 1
      %p34 = por %p32, %p33
      %p35 = scmp.ne.s32.totalorder %s27, %s30
      %p36 = scmp.eq.s32.totalorder %s17, 0
      %p37 = por %p35, %p36
      %p38 = scmp.ne.s32.totalorder %s27, %s30
      %p39 = scmp.eq.s32.totalorder %s22, 1
      %p40 = por %p38, %p39
      %p41 = scmp.ne.s32.totalorder %s30, %s31
      %p42 = scmp.eq.s32.totalorder %s22, 0
      %p43 = por %p41, %p42
      %p44 = scmp.ne.s32.totalorder %s30, %s31
      %p45 = scmp.eq.s32.totalorder %s23, 1
      %p46 = por %p44, %p45
      %p48 = scmp.ne.s32.totalorder %s31, %s47
      %p49 = scmp.eq.s32.totalorder %s23, 0
      %p50 = por %p48, %p49
      %s52 = sadd.s32 %s51, 1
      %p55 = scmp.eq.s32.totalorder %s17, 1
      %p56 = scmp.ne.s32.totalorder %s51, %s53
      %p57 = scmp.eq.s32.totalorder %s17, 0
      %p58 = por %p56, %p57
      %p59 = scmp.ne.s32.totalorder %s51, %s53
      %p60 = scmp.eq.s32.totalorder %s22, 1
      %p61 = por %p59, %p60
      %p62 = scmp.ne.s32.totalorder %s53, %s54
      %p63 = scmp.eq.s32.totalorder %s22, 0
      %p64 = por %p62, %p63
      %p65 = scmp.ne.s32.totalorder %s53, %s54
      %p66 = scmp.eq.s32.totalorder %s23, 1
      %p67 = por %p65, %p66
      %p69 = scmp.ne.s32.totalorder %s54, %s68
      %p70 = scmp.eq.s32.totalorder %s23, 0
      %p71 = por %p69, %p70
      %s73 = sadd.s32 %s72, 1
      %p76 = scmp.eq.s32.totalorder %s17, 1
      %p77 = scmp.ne.s32.totalorder %s72, %s74
      %p78 = scmp.eq.s32.totalorder %s17, 0
      %p79 = por %p77, %p78
      %p80 = scmp.ne.s32.totalorder %s72, %s74
      %p81 = scmp.eq.s32.totalorder %s22, 1
      %p82 = por %p80, %p81
      %p83 = scmp.ne.s32.totalorder %s74, %s75
      %p84 = scmp.eq.s32.totalorder %s22, 0
      %p85 = por %p83, %p84
      %p86 = scmp.ne.s32.totalorder %s74, %s75
      %p87 = scmp.eq.s32.totalorder %s23, 1
      %p88 = por %p86, %p87
      %p90 = scmp.ne.s32.totalorder %s75, %s89
      %p91 = scmp.eq.s32.totalorder %s23, 0
      %p92 = por %p90, %p91
      %s94 = sadd.s32 %s93, 1
      %p97 = scmp.eq.s32.totalorder %s17, 1
      %p98 = scmp.ne.s32.totalorder %s93, %s95
      %p99 = scmp.eq.s32.totalorder %s17, 0
      %p100 = por %p98, %p99
      %p101 = scmp.ne.s32.totalorder %s93, %s95
      %p102 = scmp.eq.s32.totalorder %s22, 1
      %p103 = por %p101, %p102
      %p104 = scmp.ne.s32.totalorder %s95, %s96
      %p105 = scmp.eq.s32.totalorder %s22, 0
      %p106 = por %p104, %p105
      %p107 = scmp.ne.s32.totalorder %s95, %s96
      %p108 = scmp.eq.s32.totalorder %s23, 1
      %p109 = por %p107, %p108
      %p111 = scmp.ne.s32.totalorder %s96, %s110
      %p112 = scmp.eq.s32.totalorder %s23, 0
      %p113 = por %p111, %p112
      %s115 = sadd.s32 %s114, 1
      %p118 = scmp.eq.s32.totalorder %s17, 1
      %p119 = scmp.ne.s32.totalorder %s114, %s116
      %p120 = scmp.eq.s32.totalorder %s17, 0
      %p121 = por %p119, %p120
      %p122 = scmp.ne.s32.totalorder %s114, %s116
      %p123 = scmp.eq.s32.totalorder %s22, 1
      %p124 = por %p122, %p123
      %p125 = scmp.ne.s32.totalorder %s116, %s117
      %p126 = scmp.eq.s32.totalorder %s22, 0
      %p127 = por %p125, %p126
      %p128 = scmp.ne.s32.totalorder %s116, %s117
      %p129 = scmp.eq.s32.totalorder %s23, 1
      %p130 = por %p128, %p129
      %p132 = scmp.ne.s32.totalorder %s117, %s131
      %p133 = scmp.eq.s32.totalorder %s23, 0
      %p134 = por %p132, %p133
      %s136 = sadd.s32 %s135, 1
      %p139 = scmp.eq.s32.totalorder %s17, 1
      %p140 = scmp.ne.s32.totalorder %s135, %s137
      %p141 = scmp.eq.s32.totalorder %s17, 0
      %p142 = por %p140, %p141
      %p143 = scmp.ne.s32.totalorder %s135, %s137
      %p144 = scmp.eq.s32.totalorder %s22, 1
      %p145 = por %p143, %p144
      %p146 = scmp.ne.s32.totalorder %s137, %s138
      %p147 = scmp.eq.s32.totalorder %s22, 0
      %p148 = por %p146, %p147
      %p149 = scmp.ne.s32.totalorder %s137, %s138
      %p150 = scmp.eq.s32.totalorder %s23, 1
      %p151 = por %p149, %p150
      %p153 = scmp.ne.s32.totalorder %s138, %s152
      %p154 = scmp.eq.s32.totalorder %s23, 0
      %p155 = por %p153, %p154
      %s156 = ssub.s32 %s17, %s24
      %p157 = scmp.eq.s32.totalorder %s156, 0
      %s159 = sadd.s32 %s158, 1
      %s160 = scalar_select %p157, %s158, %s159
      %p163 = pneg %p157
      %p164 = scmp.eq.s32.totalorder %s17, 1
      %p165 = por %p163, %p164
      %p166 = scmp.ne.s32.totalorder %s158, %s161
      %p167 = scmp.eq.s32.totalorder %s17, 0
      %p168 = por %p166, %p167
      %p169 = scmp.ne.s32.totalorder %s158, %s161
      %p170 = scmp.eq.s32.totalorder %s22, 1
      %p171 = por %p169, %p170
      %p172 = scmp.ne.s32.totalorder %s161, %s162
      %p173 = scmp.eq.s32.totalorder %s22, 0
      %p174 = por %p172, %p173
      %p175 = scmp.ne.s32.totalorder %s161, %s162
      %p176 = scmp.eq.s32.totalorder %s23, 1
      %p177 = por %p175, %p176
      %p179 = scmp.ne.s32.totalorder %s162, %s178
      %p180 = scmp.eq.s32.totalorder %s23, 0
      %p181 = por %p179, %p180
      %p182 = scmp.le.s32.totalorder 1, %s17
      %p183 = scmp.lt.s32.totalorder %s17, 3
      %p184 = pnand %p182, %p183
      %p185 = pneg %p184
      // Predicated region
      $region9: #{tpu_custom_call.1} parent=5 // pred_check
        _
      $region10: #{tpu_custom_call.1} parent=5 // pred_check_branch
        %187 = sbr.rel (%p184) target = $region12
      $region11: #{tpu_custom_call.1} parent=5 // pred_region
        %s188 = ssub.s32 %s17, 1
        // Predicated region
        $region13: #{tpu_custom_call.1} parent=11 // pred_check
          %p189 = pneg %p64
        $region14: #{tpu_custom_call.1} parent=11 // pred_check_branch
          %191 = sbr.rel (%p189) target = $region16
        $region15: #{tpu_custom_call.1} parent=11 // pred_region
          %s193 = ssub.s32 32768, 32768
          %194 = vsyncadd [#allocation5], %s193
          %s195 = sshll.u32 [#allocation4], 4
          %s196 = int_to_ptr.vmem [resolvable:$true] %s195
          %201 = dma.hbm_to_vmem [thread:$0]  %s1, 32768, %s196, [#allocation5], 256, 256, 16
        $region16: #{tpu_custom_call.1} parent=11 // pred_fallthru
          _
        // Predicated region
        $region17: #{tpu_custom_call.1} parent=11 // pred_check
          %p202 = pneg %p85
        $region18: #{tpu_custom_call.1} parent=11 // pred_check_branch
          %204 = sbr.rel (%p202) target = $region20
        $region19: #{tpu_custom_call.1} parent=11 // pred_region
          _
        $region20: #{tpu_custom_call.1} parent=11 // pred_fallthru
          _
        // Predicated region
        $region21: #{tpu_custom_call.1} parent=11 // pred_check
          %p205 = pneg %p106
        $region22: #{tpu_custom_call.1} parent=11 // pred_check_branch
          %207 = sbr.rel (%p205) target = $region24
        $region23: #{tpu_custom_call.1} parent=11 // pred_region
          %s209 = ssub.s32 1024, 1024
          %210 = vsyncadd [#allocation5], %s209
          %s211 = sshll.u32 [#allocation6], 4
          %s212 = int_to_ptr.vmem [resolvable:$true] %s211
          %217 = dma.hbm_to_vmem [thread:$0]  %s3, 1024, %s212, [#allocation5], 512, 512, 32
        $region24: #{tpu_custom_call.1} parent=11 // pred_fallthru
          _
        // Predicated region
        $region25: #{tpu_custom_call.1} parent=11 // pred_check
          %p218 = pneg %p127
        $region26: #{tpu_custom_call.1} parent=11 // pred_check_branch
          %220 = sbr.rel (%p218) target = $region28
        $region27: #{tpu_custom_call.1} parent=11 // pred_region
          %s222 = ssub.s32 512, 512
          %223 = vsyncadd [#allocation8], %s222
          %s224 = sshll.u32 [#allocation7], 4
          %s225 = int_to_ptr.vmem [resolvable:$true] %s224
          %230 = dma.hbm_to_vmem [thread:$0]  %s4, 512, %s225, [#allocation8], 256, 256, 16
        $region28: #{tpu_custom_call.1} parent=11 // pred_fallthru
          _
        // Predicated region
        $region29: #{tpu_custom_call.1} parent=11 // pred_check
          %p231 = pneg %p148
        $region30: #{tpu_custom_call.1} parent=11 // pred_check_branch
          %233 = sbr.rel (%p231) target = $region32
        $region31: #{tpu_custom_call.1} parent=11 // pred_region
          _
        $region32: #{tpu_custom_call.1} parent=11 // pred_fallthru
          _
      $region12: #{tpu_custom_call.1} parent=5 // pred_fallthru
        _
      %p234 = scmp.lt.s32.totalorder %s17, 2
      // Predicated region
      $region33: #{tpu_custom_call.1} parent=5 // pred_check
        %p235 = pneg %p234
      $region34: #{tpu_custom_call.1} parent=5 // pred_check_branch
        %237 = sbr.rel (%p235) target = $region36
      $region35: #{tpu_custom_call.1} parent=5 // pred_region
        // Predicated region
        $region37: #{tpu_custom_call.1} parent=35 // pred_check
          %p238 = pneg %p37
        $region38: #{tpu_custom_call.1} parent=35 // pred_check_branch
          %240 = sbr.rel (%p238) target = $region40
        $region39: #{tpu_custom_call.1} parent=35 // pred_region
          %s241 = sand.u32 %s27, 1
          %s242 = scalar_lea.sflag [#allocation3], %s241
          %s243 = sand.u32 %s27, 1
          %s244 = smul.addr %s243, 32
          %s245 = scalar_lea.vmem [#allocation2], %s244
          %s247 = ssub.s32 512, 512
          %248 = vsyncadd %s242, %s247
          %s249 = smul.addr %s17, 8
          %s250 = smul.addr %s249, 64
          %s251 = scalar_lea.hbm %s0, %s250
          %s253 = sshll.u32 %s245, 4
          %s254 = int_to_ptr.vmem [resolvable:$true] %s253
          %256 = dma.hbm_to_vmem [thread:$0]  %s251, 512, %s254, %s242
        $region40: #{tpu_custom_call.1} parent=35 // pred_fallthru
          _
      $region36: #{tpu_custom_call.1} parent=5 // pred_fallthru
        _
      %p257 = scmp.le.s32.totalorder 1, %s17
      %p258 = scmp.lt.s32.totalorder %s17, 3
      %p259 = pnand %p257, %p258
      %p260 = pneg %p259
      // Predicated region
      $region41: #{tpu_custom_call.1} parent=5 // pred_check
        _
      $region42: #{tpu_custom_call.1} parent=5 // pred_check_branch
        %262 = sbr.rel (%p259) target = $region44
      $region43: #{tpu_custom_call.1} parent=5 // pred_region
        %s263 = ssub.s32 %s17, 1
        %s264 = sand.u32 %s30, 1
        %s265 = scalar_lea.sflag [#allocation3], %s264
        %s266 = sand.u32 %s30, 1
        %s267 = smul.addr %s266, 32
        %s268 = scalar_lea.vmem [#allocation2], %s267
        // Predicated region
        $region45: #{tpu_custom_call.1} parent=43 // pred_check
          %p269 = pneg %p43
        $region46: #{tpu_custom_call.1} parent=43 // pred_check_branch
          %271 = sbr.rel (%p269) target = $region48
        $region47: #{tpu_custom_call.1} parent=43 // pred_region
          %272 = dma.done %s265, 512
        $region48: #{tpu_custom_call.1} parent=43 // pred_fallthru
          _
        // Predicated region
        $region49: #{tpu_custom_call.1} parent=43 // pred_check
          %p273 = pneg %p64
        $region50: #{tpu_custom_call.1} parent=43 // pred_check_branch
          %275 = sbr.rel (%p273) target = $region52
        $region51: #{tpu_custom_call.1} parent=43 // pred_region
          %276 = dma.done [#allocation5], 32768
        $region52: #{tpu_custom_call.1} parent=43 // pred_fallthru
          _
        // Predicated region
        $region53: #{tpu_custom_call.1} parent=43 // pred_check
          %p277 = pneg %p106
        $region54: #{tpu_custom_call.1} parent=43 // pred_check_branch
          %279 = sbr.rel (%p277) target = $region56
        $region55: #{tpu_custom_call.1} parent=43 // pred_region
          %280 = dma.done [#allocation5], 1024
        $region56: #{tpu_custom_call.1} parent=43 // pred_fallthru
          _
        // Predicated region
        $region57: #{tpu_custom_call.1} parent=43 // pred_check
          %p281 = pneg %p127
        $region58: #{tpu_custom_call.1} parent=43 // pred_check_branch
          %283 = sbr.rel (%p281) target = $region60
        $region59: #{tpu_custom_call.1} parent=43 // pred_region
          %284 = dma.done [#allocation8], 512
        $region60: #{tpu_custom_call.1} parent=43 // pred_fallthru
          _
        %s285 = sand.u32 %s30, 1
        %s286 = scalar_lea.sflag [#allocation3], %s285
        %s287 = sand.u32 %s30, 1
        %s288 = smul.addr %s287, 32
        %s289 = scalar_lea.vmem [#allocation2], %s288
        %p290 = pneg %p43
        %p291 = pneg %p40
        %p292 = pneg %p64
        %p293 = pneg %p61
        %p294 = pneg %p85
        %p295 = pneg %p82
        %p296 = pneg %p106
        %p297 = pneg %p103
        %p298 = pneg %p127
        %p299 = pneg %p124
        %p300 = pneg %p148
        %p301 = pneg %p145
        %p302 = pneg %p174
        %p303 = pneg %p171
        %p304 = scmp.lt.s32.totalorder %s22, 1
        %s305 = scalar_select %p304, %s22, 1
        %s306 = smul.addr %s305, 12
        %s307 = smul.addr %s306, 8
        %s308 = scalar_lea.vmem %s6, %s307
        %p309 = scmp.lt.s32.totalorder %s22, 1
        %s310 = scalar_select %p309, %s22, 1
        %s311 = smul.addr %s310, 12
        %s312 = smul.addr %s311, 8
        %s313 = scalar_lea.vmem %s6, %s312
        %v315 = vld [vmem:[%s268] sm:$0xff]
        %v316 = vld [vmem:[%s268 + $0x8] sm:$0xff]
        %v317 = vld [vmem:[%s268 + $0x10] sm:$0xff]
        %v318 = vld [vmem:[%s268 + $0x18] sm:$0xff]
        %v319 = vunpack.c.l.bf16 %v315
        %v320 = vunpack.c.h.bf16 %v315
        %v321 = vunpack.c.l.bf16 %v316
        %v322 = vunpack.c.h.bf16 %v316
        %v323 = vunpack.c.l.bf16 %v317
        %v324 = vunpack.c.h.bf16 %v317
        %v325 = vunpack.c.l.bf16 %v318
        %v326 = vunpack.c.h.bf16 %v318
        %v327 = vmul.f32 %v319, %v319
        %v328 = vmul.f32 %v320, %v320
        %v329 = vmul.f32 %v321, %v321
        %v330 = vmul.f32 %v322, %v322
        %v331 = vmul.f32 %v323, %v323
        %v332 = vmul.f32 %v324, %v324
        %v333 = vmul.f32 %v325, %v325
        %v334 = vmul.f32 %v326, %v326
        %v335 = vadd.f32 %v327, %v328
        %v336 = vadd.f32 %v335, %v329
        %v337 = vadd.f32 %v336, %v330
        %v338 = vadd.f32 %v337, %v331
        %v339 = vadd.f32 %v338, %v332
        %v340 = vadd.f32 %v339, %v333
        %v341 = vadd.f32 %v340, %v334
        %342 = vadd.xlane.f32.xlu0 %v341
        %v343 = vpop.xlane.xlu0 %342
        %v344 = vmax.f32 %v343, 1e-24
        %v345 = vrsqrt.pop %v344
        %v346 = vld [vmem:[#allocation4] sm:$0xff]
        %v347 = vld [vmem:[#allocation4 + $0x8] sm:$0xff]
        %v348 = vld [vmem:[#allocation4 + $0x10] sm:$0xff]
        %v349 = vld [vmem:[#allocation4 + $0x18] sm:$0xff]
        %v350 = vld [vmem:[#allocation4 + $0x20] sm:$0xff]
        %v351 = vld [vmem:[#allocation4 + $0x28] sm:$0xff]
        %v352 = vld [vmem:[#allocation4 + $0x30] sm:$0xff]
        %v353 = vld [vmem:[#allocation4 + $0x38] sm:$0xff]
        %v354 = vld [vmem:[#allocation4 + $0x40] sm:$0xff]
        %v355 = vld [vmem:[#allocation4 + $0x48] sm:$0xff]
        %v356 = vld [vmem:[#allocation4 + $0x50] sm:$0xff]
        %v357 = vld [vmem:[#allocation4 + $0x58] sm:$0xff]
        %v358 = vld [vmem:[#allocation4 + $0x60] sm:$0xff]
        %v359 = vld [vmem:[#allocation4 + $0x68] sm:$0xff]
        %v360 = vld [vmem:[#allocation4 + $0x70] sm:$0xff]
        %v361 = vld [vmem:[#allocation4 + $0x78] sm:$0xff]
        %v362 = vld [vmem:[#allocation4 + $0x80] sm:$0xff]
        %v363 = vld [vmem:[#allocation4 + $0x88] sm:$0xff]
        %v364 = vld [vmem:[#allocation4 + $0x90] sm:$0xff]
        %v365 = vld [vmem:[#allocation4 + $0x98] sm:$0xff]
        %v366 = vld [vmem:[#allocation4 + $0xa0] sm:$0xff]
        %v367 = vld [vmem:[#allocation4 + $0xa8] sm:$0xff]
        %v368 = vld [vmem:[#allocation4 + $0xb0] sm:$0xff]
        %v369 = vld [vmem:[#allocation4 + $0xb8] sm:$0xff]
        %v370 = vld [vmem:[#allocation4 + $0xc0] sm:$0xff]
        %v371 = vld [vmem:[#allocation4 + $0xc8] sm:$0xff]
        %v372 = vld [vmem:[#allocation4 + $0xd0] sm:$0xff]
        %v373 = vld [vmem:[#allocation4 + $0xd8] sm:$0xff]
        %v374 = vld [vmem:[#allocation4 + $0xe0] sm:$0xff]
        %v375 = vld [vmem:[#allocation4 + $0xe8] sm:$0xff]
        %v376 = vld [vmem:[#allocation4 + $0xf0] sm:$0xff]
        %v377 = vld [vmem:[#allocation4 + $0xf8] sm:$0xff]
        %v378 = vld [vmem:[#allocation4 + $0x100] sm:$0xff]
        %v379 = vld [vmem:[#allocation4 + $0x108] sm:$0xff]
        %v380 = vld [vmem:[#allocation4 + $0x110] sm:$0xff]
        %v381 = vld [vmem:[#allocation4 + $0x118] sm:$0xff]
        %v382 = vld [vmem:[#allocation4 + $0x120] sm:$0xff]
        %v383 = vld [vmem:[#allocation4 + $0x128] sm:$0xff]
        %v384 = vld [vmem:[#allocation4 + $0x130] sm:$0xff]
        %v385 = vld [vmem:[#allocation4 + $0x138] sm:$0xff]
        %v386 = vld [vmem:[#allocation4 + $0x140] sm:$0xff]
        %v387 = vld [vmem:[#allocation4 + $0x148] sm:$0xff]
        %v388 = vld [vmem:[#allocation4 + $0x150] sm:$0xff]
        %v389 = vld [vmem:[#allocation4 + $0x158] sm:$0xff]
        %v390 = vld [vmem:[#allocation4 + $0x160] sm:$0xff]
        %v391 = vld [vmem:[#allocation4 + $0x168] sm:$0xff]
        %v392 = vld [vmem:[#allocation4 + $0x170] sm:$0xff]
        %v393 = vld [vmem:[#allocation4 + $0x178] sm:$0xff]
        %v394 = vld [vmem:[#allocation4 + $0x180] sm:$0xff]
        %v395 = vld [vmem:[#allocation4 + $0x188] sm:$0xff]
        %v396 = vld [vmem:[#allocation4 + $0x190] sm:$0xff]
        %v397 = vld [vmem:[#allocation4 + $0x198] sm:$0xff]
        %v398 = vld [vmem:[#allocation4 + $0x1a0] sm:$0xff]
        %v399 = vld [vmem:[#allocation4 + $0x1a8] sm:$0xff]
        %v400 = vld [vmem:[#allocation4 + $0x1b0] sm:$0xff]
        %v401 = vld [vmem:[#allocation4 + $0x1b8] sm:$0xff]
        %v402 = vld [vmem:[#allocation4 + $0x1c0] sm:$0xff]
        %v403 = vld [vmem:[#allocation4 + $0x1c8] sm:$0xff]
        %v404 = vld [vmem:[#allocation4 + $0x1d0] sm:$0xff]
        %v405 = vld [vmem:[#allocation4 + $0x1d8] sm:$0xff]
        %v406 = vld [vmem:[#allocation4 + $0x1e0] sm:$0xff]
        %v407 = vld [vmem:[#allocation4 + $0x1e8] sm:$0xff]
        %v408 = vld [vmem:[#allocation4 + $0x1f0] sm:$0xff]
        %v409 = vld [vmem:[#allocation4 + $0x1f8] sm:$0xff]
        %v410 = vld [vmem:[#allocation4 + $0x200] sm:$0xff]
        %v411 = vld [vmem:[#allocation4 + $0x208] sm:$0xff]
        %v412 = vld [vmem:[#allocation4 + $0x210] sm:$0xff]
        %v413 = vld [vmem:[#allocation4 + $0x218] sm:$0xff]
        %v414 = vld [vmem:[#allocation4 + $0x220] sm:$0xff]
        %v415 = vld [vmem:[#allocation4 + $0x228] sm:$0xff]
        %v416 = vld [vmem:[#allocation4 + $0x230] sm:$0xff]
        %v417 = vld [vmem:[#allocation4 + $0x238] sm:$0xff]
        %v418 = vld [vmem:[#allocation4 + $0x240] sm:$0xff]
        %v419 = vld [vmem:[#allocation4 + $0x248] sm:$0xff]
        %v420 = vld [vmem:[#allocation4 + $0x250] sm:$0xff]
        %v421 = vld [vmem:[#allocation4 + $0x258] sm:$0xff]
        %v422 = vld [vmem:[#allocation4 + $0x260] sm:$0xff]
        %v423 = vld [vmem:[#allocation4 + $0x268] sm:$0xff]
        %v424 = vld [vmem:[#allocation4 + $0x270] sm:$0xff]
        %v425 = vld [vmem:[#allocation4 + $0x278] sm:$0xff]
        %v426 = vld [vmem:[#allocation4 + $0x280] sm:$0xff]
        %v427 = vld [vmem:[#allocation4 + $0x288] sm:$0xff]
        %v428 = vld [vmem:[#allocation4 + $0x290] sm:$0xff]
        %v429 = vld [vmem:[#allocation4 + $0x298] sm:$0xff]
        %v430 = vld [vmem:[#allocation4 + $0x2a0] sm:$0xff]
        %v431 = vld [vmem:[#allocation4 + $0x2a8] sm:$0xff]
        %v432 = vld [vmem:[#allocation4 + $0x2b0] sm:$0xff]
        %v433 = vld [vmem:[#allocation4 + $0x2b8] sm:$0xff]
        %v434 = vld [vmem:[#allocation4 + $0x2c0] sm:$0xff]
        %v435 = vld [vmem:[#allocation4 + $0x2c8] sm:$0xff]
        %v436 = vld [vmem:[#allocation4 + $0x2d0] sm:$0xff]
        %v437 = vld [vmem:[#allocation4 + $0x2d8] sm:$0xff]
        %v438 = vld [vmem:[#allocation4 + $0x2e0] sm:$0xff]
        %v439 = vld [vmem:[#allocation4 + $0x2e8] sm:$0xff]
        %v440 = vld [vmem:[#allocation4 + $0x2f0] sm:$0xff]
        %v441 = vld [vmem:[#allocation4 + $0x2f8] sm:$0xff]
        %v442 = vld [vmem:[#allocation4 + $0x300] sm:$0xff]
        %v443 = vld [vmem:[#allocation4 + $0x308] sm:$0xff]
        %v444 = vld [vmem:[#allocation4 + $0x310] sm:$0xff]
        %v445 = vld [vmem:[#allocation4 + $0x318] sm:$0xff]
        %v446 = vld [vmem:[#allocation4 + $0x320] sm:$0xff]
        %v447 = vld [vmem:[#allocation4 + $0x328] sm:$0xff]
        %v448 = vld [vmem:[#allocation4 + $0x330] sm:$0xff]
        %v449 = vld [vmem:[#allocation4 + $0x338] sm:$0xff]
        %v450 = vld [vmem:[#allocation4 + $0x340] sm:$0xff]
        %v451 = vld [vmem:[#allocation4 + $0x348] sm:$0xff]
        %v452 = vld [vmem:[#allocation4 + $0x350] sm:$0xff]
        %v453 = vld [vmem:[#allocation4 + $0x358] sm:$0xff]
        %v454 = vld [vmem:[#allocation4 + $0x360] sm:$0xff]
        %v455 = vld [vmem:[#allocation4 + $0x368] sm:$0xff]
        %v456 = vld [vmem:[#allocation4 + $0x370] sm:$0xff]
        %v457 = vld [vmem:[#allocation4 + $0x378] sm:$0xff]
        %v458 = vld [vmem:[#allocation4 + $0x380] sm:$0xff]
        %v459 = vld [vmem:[#allocation4 + $0x388] sm:$0xff]
        %v460 = vld [vmem:[#allocation4 + $0x390] sm:$0xff]
        %v461 = vld [vmem:[#allocation4 + $0x398] sm:$0xff]
        %v462 = vld [vmem:[#allocation4 + $0x3a0] sm:$0xff]
        %v463 = vld [vmem:[#allocation4 + $0x3a8] sm:$0xff]
        %v464 = vld [vmem:[#allocation4 + $0x3b0] sm:$0xff]
        %v465 = vld [vmem:[#allocation4 + $0x3b8] sm:$0xff]
        %v466 = vld [vmem:[#allocation4 + $0x3c0] sm:$0xff]
        %v467 = vld [vmem:[#allocation4 + $0x3c8] sm:$0xff]
        %v468 = vld [vmem:[#allocation4 + $0x3d0] sm:$0xff]
        %v469 = vld [vmem:[#allocation4 + $0x3d8] sm:$0xff]
        %v470 = vld [vmem:[#allocation4 + $0x3e0] sm:$0xff]
        %v471 = vld [vmem:[#allocation4 + $0x3e8] sm:$0xff]
        %v472 = vld [vmem:[#allocation4 + $0x3f0] sm:$0xff]
        %v473 = vld [vmem:[#allocation4 + $0x3f8] sm:$0xff]
        %v474 = vld [vmem:[#allocation4 + $0x400] sm:$0xff]
        %v475 = vld [vmem:[#allocation4 + $0x408] sm:$0xff]
        %v476 = vld [vmem:[#allocation4 + $0x410] sm:$0xff]
        %v477 = vld [vmem:[#allocation4 + $0x418] sm:$0xff]
        %v478 = vld [vmem:[#allocation4 + $0x420] sm:$0xff]
        %v479 = vld [vmem:[#allocation4 + $0x428] sm:$0xff]
        %v480 = vld [vmem:[#allocation4 + $0x430] sm:$0xff]
        %v481 = vld [vmem:[#allocation4 + $0x438] sm:$0xff]
        %v482 = vld [vmem:[#allocation4 + $0x440] sm:$0xff]
        %v483 = vld [vmem:[#allocation4 + $0x448] sm:$0xff]
        %v484 = vld [vmem:[#allocation4 + $0x450] sm:$0xff]
        %v485 = vld [vmem:[#allocation4 + $0x458] sm:$0xff]
        %v486 = vld [vmem:[#allocation4 + $0x460] sm:$0xff]
        %v487 = vld [vmem:[#allocation4 + $0x468] sm:$0xff]
        %v488 = vld [vmem:[#allocation4 + $0x470] sm:$0xff]
        %v489 = vld [vmem:[#allocation4 + $0x478] sm:$0xff]
        %v490 = vld [vmem:[#allocation4 + $0x480] sm:$0xff]
        %v491 = vld [vmem:[#allocation4 + $0x488] sm:$0xff]
        %v492 = vld [vmem:[#allocation4 + $0x490] sm:$0xff]
        %v493 = vld [vmem:[#allocation4 + $0x498] sm:$0xff]
        %v494 = vld [vmem:[#allocation4 + $0x4a0] sm:$0xff]
        %v495 = vld [vmem:[#allocation4 + $0x4a8] sm:$0xff]
        %v496 = vld [vmem:[#allocation4 + $0x4b0] sm:$0xff]
        %v497 = vld [vmem:[#allocation4 + $0x4b8] sm:$0xff]
        %v498 = vld [vmem:[#allocation4 + $0x4c0] sm:$0xff]
        %v499 = vld [vmem:[#allocation4 + $0x4c8] sm:$0xff]
        %v500 = vld [vmem:[#allocation4 + $0x4d0] sm:$0xff]
        %v501 = vld [vmem:[#allocation4 + $0x4d8] sm:$0xff]
        %v502 = vld [vmem:[#allocation4 + $0x4e0] sm:$0xff]
        %v503 = vld [vmem:[#allocation4 + $0x4e8] sm:$0xff]
        %v504 = vld [vmem:[#allocation4 + $0x4f0] sm:$0xff]
        %v505 = vld [vmem:[#allocation4 + $0x4f8] sm:$0xff]
        %v506 = vld [vmem:[#allocation4 + $0x500] sm:$0xff]
        %v507 = vld [vmem:[#allocation4 + $0x508] sm:$0xff]
        %v508 = vld [vmem:[#allocation4 + $0x510] sm:$0xff]
        %v509 = vld [vmem:[#allocation4 + $0x518] sm:$0xff]
        %v510 = vld [vmem:[#allocation4 + $0x520] sm:$0xff]
        %v511 = vld [vmem:[#allocation4 + $0x528] sm:$0xff]
        %v512 = vld [vmem:[#allocation4 + $0x530] sm:$0xff]
        %v513 = vld [vmem:[#allocation4 + $0x538] sm:$0xff]
        %v514 = vld [vmem:[#allocation4 + $0x540] sm:$0xff]
        %v515 = vld [vmem:[#allocation4 + $0x548] sm:$0xff]
        %v516 = vld [vmem:[#allocation4 + $0x550] sm:$0xff]
        %v517 = vld [vmem:[#allocation4 + $0x558] sm:$0xff]
        %v518 = vld [vmem:[#allocation4 + $0x560] sm:$0xff]
        %v519 = vld [vmem:[#allocation4 + $0x568] sm:$0xff]
        %v520 = vld [vmem:[#allocation4 + $0x570] sm:$0xff]
        %v521 = vld [vmem:[#allocation4 + $0x578] sm:$0xff]
        %v522 = vld [vmem:[#allocation4 + $0x580] sm:$0xff]
        %v523 = vld [vmem:[#allocation4 + $0x588] sm:$0xff]
        %v524 = vld [vmem:[#allocation4 + $0x590] sm:$0xff]
        %v525 = vld [vmem:[#allocation4 + $0x598] sm:$0xff]
        %v526 = vld [vmem:[#allocation4 + $0x5a0] sm:$0xff]
        %v527 = vld [vmem:[#allocation4 + $0x5a8] sm:$0xff]
        %v528 = vld [vmem:[#allocation4 + $0x5b0] sm:$0xff]
        %v529 = vld [vmem:[#allocation4 + $0x5b8] sm:$0xff]
        %v530 = vld [vmem:[#allocation4 + $0x5c0] sm:$0xff]
        %v531 = vld [vmem:[#allocation4 + $0x5c8] sm:$0xff]
        %v532 = vld [vmem:[#allocation4 + $0x5d0] sm:$0xff]
        %v533 = vld [vmem:[#allocation4 + $0x5d8] sm:$0xff]
        %v534 = vld [vmem:[#allocation4 + $0x5e0] sm:$0xff]
        %v535 = vld [vmem:[#allocation4 + $0x5e8] sm:$0xff]
        %v536 = vld [vmem:[#allocation4 + $0x5f0] sm:$0xff]
        %v537 = vld [vmem:[#allocation4 + $0x5f8] sm:$0xff]
        %v538 = vld [vmem:[#allocation4 + $0x600] sm:$0xff]
        %v539 = vld [vmem:[#allocation4 + $0x608] sm:$0xff]
        %v540 = vld [vmem:[#allocation4 + $0x610] sm:$0xff]
        %v541 = vld [vmem:[#allocation4 + $0x618] sm:$0xff]
        %v542 = vld [vmem:[#allocation4 + $0x620] sm:$0xff]
        %v543 = vld [vmem:[#allocation4 + $0x628] sm:$0xff]
        %v544 = vld [vmem:[#allocation4 + $0x630] sm:$0xff]
        %v545 = vld [vmem:[#allocation4 + $0x638] sm:$0xff]
        %v546 = vld [vmem:[#allocation4 + $0x640] sm:$0xff]
        %v547 = vld [vmem:[#allocation4 + $0x648] sm:$0xff]
        %v548 = vld [vmem:[#allocation4 + $0x650] sm:$0xff]
        %v549 = vld [vmem:[#allocation4 + $0x658] sm:$0xff]
        %v550 = vld [vmem:[#allocation4 + $0x660] sm:$0xff]
        %v551 = vld [vmem:[#allocation4 + $0x668] sm:$0xff]
        %v552 = vld [vmem:[#allocation4 + $0x670] sm:$0xff]
        %v553 = vld [vmem:[#allocation4 + $0x678] sm:$0xff]
        %v554 = vld [vmem:[#allocation4 + $0x680] sm:$0xff]
        %v555 = vld [vmem:[#allocation4 + $0x688] sm:$0xff]
        %v556 = vld [vmem:[#allocation4 + $0x690] sm:$0xff]
        %v557 = vld [vmem:[#allocation4 + $0x698] sm:$0xff]
        %v558 = vld [vmem:[#allocation4 + $0x6a0] sm:$0xff]
        %v559 = vld [vmem:[#allocation4 + $0x6a8] sm:$0xff]
        %v560 = vld [vmem:[#allocation4 + $0x6b0] sm:$0xff]
        %v561 = vld [vmem:[#allocation4 + $0x6b8] sm:$0xff]
        %v562 = vld [vmem:[#allocation4 + $0x6c0] sm:$0xff]
        %v563 = vld [vmem:[#allocation4 + $0x6c8] sm:$0xff]
        %v564 = vld [vmem:[#allocation4 + $0x6d0] sm:$0xff]
        %v565 = vld [vmem:[#allocation4 + $0x6d8] sm:$0xff]
        %v566 = vld [vmem:[#allocation4 + $0x6e0] sm:$0xff]
        %v567 = vld [vmem:[#allocation4 + $0x6e8] sm:$0xff]
        %v568 = vld [vmem:[#allocation4 + $0x6f0] sm:$0xff]
        %v569 = vld [vmem:[#allocation4 + $0x6f8] sm:$0xff]
        %v570 = vld [vmem:[#allocation4 + $0x700] sm:$0xff]
        %v571 = vld [vmem:[#allocation4 + $0x708] sm:$0xff]
        %v572 = vld [vmem:[#allocation4 + $0x710] sm:$0xff]
        %v573 = vld [vmem:[#allocation4 + $0x718] sm:$0xff]
        %v574 = vld [vmem:[#allocation4 + $0x720] sm:$0xff]
        %v575 = vld [vmem:[#allocation4 + $0x728] sm:$0xff]
        %v576 = vld [vmem:[#allocation4 + $0x730] sm:$0xff]
        %v577 = vld [vmem:[#allocation4 + $0x738] sm:$0xff]
        %v578 = vld [vmem:[#allocation4 + $0x740] sm:$0xff]
        %v579 = vld [vmem:[#allocation4 + $0x748] sm:$0xff]
        %v580 = vld [vmem:[#allocation4 + $0x750] sm:$0xff]
        %v581 = vld [vmem:[#allocation4 + $0x758] sm:$0xff]
        %v582 = vld [vmem:[#allocation4 + $0x760] sm:$0xff]
        %v583 = vld [vmem:[#allocation4 + $0x768] sm:$0xff]
        %v584 = vld [vmem:[#allocation4 + $0x770] sm:$0xff]
        %v585 = vld [vmem:[#allocation4 + $0x778] sm:$0xff]
        %v586 = vld [vmem:[#allocation4 + $0x780] sm:$0xff]
        %v587 = vld [vmem:[#allocation4 + $0x788] sm:$0xff]
        %v588 = vld [vmem:[#allocation4 + $0x790] sm:$0xff]
        %v589 = vld [vmem:[#allocation4 + $0x798] sm:$0xff]
        %v590 = vld [vmem:[#allocation4 + $0x7a0] sm:$0xff]
        %v591 = vld [vmem:[#allocation4 + $0x7a8] sm:$0xff]
        %v592 = vld [vmem:[#allocation4 + $0x7b0] sm:$0xff]
        %v593 = vld [vmem:[#allocation4 + $0x7b8] sm:$0xff]
        %v594 = vld [vmem:[#allocation4 + $0x7c0] sm:$0xff]
        %v595 = vld [vmem:[#allocation4 + $0x7c8] sm:$0xff]
        %v596 = vld [vmem:[#allocation4 + $0x7d0] sm:$0xff]
        %v597 = vld [vmem:[#allocation4 + $0x7d8] sm:$0xff]
        %v598 = vld [vmem:[#allocation4 + $0x7e0] sm:$0xff]
        %v599 = vld [vmem:[#allocation4 + $0x7e8] sm:$0xff]
        %v600 = vld [vmem:[#allocation4 + $0x7f0] sm:$0xff]
        %v601 = vld [vmem:[#allocation4 + $0x7f8] sm:$0xff]
        %v606 = vunpack.c.l.b16 %v315
        %v607 = vunpack.c.h.b16 %v315
        %v608 = vunpack.c.l.b16 %v316
        %v609 = vunpack.c.h.b16 %v316
        %v610 = vunpack.c.l.b16 %v317
        %v611 = vunpack.c.h.b16 %v317
        %v612 = vunpack.c.l.b16 %v318
        %v613 = vunpack.c.h.b16 %v318
        %v614 = vpack.c.b16 %v606, %v606
        %v615 = vpack.c.b16 %v607, %v607
        %v616 = vpack.c.b16 %v608, %v608
        %v617 = vpack.c.b16 %v609, %v609
        %v618 = vpack.c.b16 %v610, %v610
        %v619 = vpack.c.b16 %v611, %v611
        %v620 = vpack.c.b16 %v612, %v612
        %v621 = vpack.c.b16 %v613, %v613
        %v886 = vunpack.c.l.b16 %v346
        %v887 = vunpack.c.h.b16 %v346
        %v888 = vunpack.c.l.b16 %v347
        %v889 = vunpack.c.h.b16 %v347
        %v890 = vunpack.c.l.b16 %v348
        %v891 = vunpack.c.h.b16 %v348
        %v892 = vunpack.c.l.b16 %v349
        %v893 = vunpack.c.h.b16 %v349
        %v894 = vunpack.c.l.b16 %v350
        %v895 = vunpack.c.h.b16 %v350
        %v896 = vunpack.c.l.b16 %v351
        %v897 = vunpack.c.h.b16 %v351
        %v898 = vunpack.c.l.b16 %v352
        %v899 = vunpack.c.h.b16 %v352
        %v900 = vunpack.c.l.b16 %v353
        %v901 = vunpack.c.h.b16 %v353
        %v902 = vunpack.c.l.b16 %v354
        %v903 = vunpack.c.h.b16 %v354
        %v904 = vunpack.c.l.b16 %v355
        %v905 = vunpack.c.h.b16 %v355
        %v906 = vunpack.c.l.b16 %v356
        %v907 = vunpack.c.h.b16 %v356
        %v908 = vunpack.c.l.b16 %v357
        %v909 = vunpack.c.h.b16 %v357
        %v910 = vunpack.c.l.b16 %v358
        %v911 = vunpack.c.h.b16 %v358
        %v912 = vunpack.c.l.b16 %v359
        %v913 = vunpack.c.h.b16 %v359
        %v914 = vunpack.c.l.b16 %v360
        %v915 = vunpack.c.h.b16 %v360
        %v916 = vunpack.c.l.b16 %v361
        %v917 = vunpack.c.h.b16 %v361
        %v918 = vunpack.c.l.b16 %v362
        %v919 = vunpack.c.h.b16 %v362
        %v920 = vunpack.c.l.b16 %v363
        %v921 = vunpack.c.h.b16 %v363
        %v922 = vunpack.c.l.b16 %v364
        %v923 = vunpack.c.h.b16 %v364
        %v924 = vunpack.c.l.b16 %v365
        %v925 = vunpack.c.h.b16 %v365
        %v926 = vunpack.c.l.b16 %v366
        %v927 = vunpack.c.h.b16 %v366
        %v928 = vunpack.c.l.b16 %v367
        %v929 = vunpack.c.h.b16 %v367
        %v930 = vunpack.c.l.b16 %v368
        %v931 = vunpack.c.h.b16 %v368
        %v932 = vunpack.c.l.b16 %v369
        %v933 = vunpack.c.h.b16 %v369
        %v934 = vunpack.c.l.b16 %v370
        %v935 = vunpack.c.h.b16 %v370
        %v936 = vunpack.c.l.b16 %v371
        %v937 = vunpack.c.h.b16 %v371
        %v938 = vunpack.c.l.b16 %v372
        %v939 = vunpack.c.h.b16 %v372
        %v940 = vunpack.c.l.b16 %v373
        %v941 = vunpack.c.h.b16 %v373
        %v942 = vunpack.c.l.b16 %v374
        %v943 = vunpack.c.h.b16 %v374
        %v944 = vunpack.c.l.b16 %v375
        %v945 = vunpack.c.h.b16 %v375
        %v946 = vunpack.c.l.b16 %v376
        %v947 = vunpack.c.h.b16 %v376
        %v948 = vunpack.c.l.b16 %v377
        %v949 = vunpack.c.h.b16 %v377
        %v950 = vunpack.c.l.b16 %v378
        %v951 = vunpack.c.h.b16 %v378
        %v952 = vunpack.c.l.b16 %v379
        %v953 = vunpack.c.h.b16 %v379
        %v954 = vunpack.c.l.b16 %v380
        %v955 = vunpack.c.h.b16 %v380
        %v956 = vunpack.c.l.b16 %v381
        %v957 = vunpack.c.h.b16 %v381
        %v958 = vunpack.c.l.b16 %v382
        %v959 = vunpack.c.h.b16 %v382
        %v960 = vunpack.c.l.b16 %v383
        %v961 = vunpack.c.h.b16 %v383
        %v962 = vunpack.c.l.b16 %v384
        %v963 = vunpack.c.h.b16 %v384
        %v964 = vunpack.c.l.b16 %v385
        %v965 = vunpack.c.h.b16 %v385
        %v966 = vunpack.c.l.b16 %v386
        %v967 = vunpack.c.h.b16 %v386
        %v968 = vunpack.c.l.b16 %v387
        %v969 = vunpack.c.h.b16 %v387
        %v970 = vunpack.c.l.b16 %v388
        %v971 = vunpack.c.h.b16 %v388
        %v972 = vunpack.c.l.b16 %v389
        %v973 = vunpack.c.h.b16 %v389
        %v974 = vunpack.c.l.b16 %v390
        %v975 = vunpack.c.h.b16 %v390
        %v976 = vunpack.c.l.b16 %v391
        %v977 = vunpack.c.h.b16 %v391
        %v978 = vunpack.c.l.b16 %v392
        %v979 = vunpack.c.h.b16 %v392
        %v980 = vunpack.c.l.b16 %v393
        %v981 = vunpack.c.h.b16 %v393
        %v982 = vunpack.c.l.b16 %v394
        %v983 = vunpack.c.h.b16 %v394
        %v984 = vunpack.c.l.b16 %v395
        %v985 = vunpack.c.h.b16 %v395
        %v986 = vunpack.c.l.b16 %v396
        %v987 = vunpack.c.h.b16 %v396
        %v988 = vunpack.c.l.b16 %v397
        %v989 = vunpack.c.h.b16 %v397
        %v990 = vunpack.c.l.b16 %v398
        %v991 = vunpack.c.h.b16 %v398
        %v992 = vunpack.c.l.b16 %v399
        %v993 = vunpack.c.h.b16 %v399
        %v994 = vunpack.c.l.b16 %v400
        %v995 = vunpack.c.h.b16 %v400
        %v996 = vunpack.c.l.b16 %v401
        %v997 = vunpack.c.h.b16 %v401
        %v998 = vunpack.c.l.b16 %v402
        %v999 = vunpack.c.h.b16 %v402
        %v1000 = vunpack.c.l.b16 %v403
        %v1001 = vunpack.c.h.b16 %v403
        %v1002 = vunpack.c.l.b16 %v404
        %v1003 = vunpack.c.h.b16 %v404
        %v1004 = vunpack.c.l.b16 %v405
        %v1005 = vunpack.c.h.b16 %v405
        %v1006 = vunpack.c.l.b16 %v406
        %v1007 = vunpack.c.h.b16 %v406
        %v1008 = vunpack.c.l.b16 %v407
        %v1009 = vunpack.c.h.b16 %v407
        %v1010 = vunpack.c.l.b16 %v408
        %v1011 = vunpack.c.h.b16 %v408
        %v1012 = vunpack.c.l.b16 %v409
        %v1013 = vunpack.c.h.b16 %v409
        %v1014 = vunpack.c.l.b16 %v410
        %v1015 = vunpack.c.h.b16 %v410
        %v1016 = vunpack.c.l.b16 %v411
        %v1017 = vunpack.c.h.b16 %v411
        %v1018 = vunpack.c.l.b16 %v412
        %v1019 = vunpack.c.h.b16 %v412
        %v1020 = vunpack.c.l.b16 %v413
        %v1021 = vunpack.c.h.b16 %v413
        %v1022 = vunpack.c.l.b16 %v414
        %v1023 = vunpack.c.h.b16 %v414
        %v1024 = vunpack.c.l.b16 %v415
        %v1025 = vunpack.c.h.b16 %v415
        %v1026 = vunpack.c.l.b16 %v416
        %v1027 = vunpack.c.h.b16 %v416
        %v1028 = vunpack.c.l.b16 %v417
        %v1029 = vunpack.c.h.b16 %v417
        %v1030 = vunpack.c.l.b16 %v418
        %v1031 = vunpack.c.h.b16 %v418
        %v1032 = vunpack.c.l.b16 %v419
        %v1033 = vunpack.c.h.b16 %v419
        %v1034 = vunpack.c.l.b16 %v420
        %v1035 = vunpack.c.h.b16 %v420
        %v1036 = vunpack.c.l.b16 %v421
        %v1037 = vunpack.c.h.b16 %v421
        %v1038 = vunpack.c.l.b16 %v422
        %v1039 = vunpack.c.h.b16 %v422
        %v1040 = vunpack.c.l.b16 %v423
        %v1041 = vunpack.c.h.b16 %v423
        %v1042 = vunpack.c.l.b16 %v424
        %v1043 = vunpack.c.h.b16 %v424
        %v1044 = vunpack.c.l.b16 %v425
        %v1045 = vunpack.c.h.b16 %v425
        %v1046 = vunpack.c.l.b16 %v426
        %v1047 = vunpack.c.h.b16 %v426
        %v1048 = vunpack.c.l.b16 %v427
        %v1049 = vunpack.c.h.b16 %v427
        %v1050 = vunpack.c.l.b16 %v428
        %v1051 = vunpack.c.h.b16 %v428
        %v1052 = vunpack.c.l.b16 %v429
        %v1053 = vunpack.c.h.b16 %v429
        %v1054 = vunpack.c.l.b16 %v430
        %v1055 = vunpack.c.h.b16 %v430
        %v1056 = vunpack.c.l.b16 %v431
        %v1057 = vunpack.c.h.b16 %v431
        %v1058 = vunpack.c.l.b16 %v432
        %v1059 = vunpack.c.h.b16 %v432
        %v1060 = vunpack.c.l.b16 %v433
        %v1061 = vunpack.c.h.b16 %v433
        %v1062 = vunpack.c.l.b16 %v434
        %v1063 = vunpack.c.h.b16 %v434
        %v1064 = vunpack.c.l.b16 %v435
        %v1065 = vunpack.c.h.b16 %v435
        %v1066 = vunpack.c.l.b16 %v436
        %v1067 = vunpack.c.h.b16 %v436
        %v1068 = vunpack.c.l.b16 %v437
        %v1069 = vunpack.c.h.b16 %v437
        %v1070 = vunpack.c.l.b16 %v438
        %v1071 = vunpack.c.h.b16 %v438
        %v1072 = vunpack.c.l.b16 %v439
        %v1073 = vunpack.c.h.b16 %v439
        %v1074 = vunpack.c.l.b16 %v440
        %v1075 = vunpack.c.h.b16 %v440
        %v1076 = vunpack.c.l.b16 %v441
        %v1077 = vunpack.c.h.b16 %v441
        %v1078 = vunpack.c.l.b16 %v442
        %v1079 = vunpack.c.h.b16 %v442
        %v1080 = vunpack.c.l.b16 %v443
        %v1081 = vunpack.c.h.b16 %v443
        %v1082 = vunpack.c.l.b16 %v444
        %v1083 = vunpack.c.h.b16 %v444
        %v1084 = vunpack.c.l.b16 %v445
        %v1085 = vunpack.c.h.b16 %v445
        %v1086 = vunpack.c.l.b16 %v446
        %v1087 = vunpack.c.h.b16 %v446
        %v1088 = vunpack.c.l.b16 %v447
        %v1089 = vunpack.c.h.b16 %v447
        %v1090 = vunpack.c.l.b16 %v448
        %v1091 = vunpack.c.h.b16 %v448
        %v1092 = vunpack.c.l.b16 %v449
        %v1093 = vunpack.c.h.b16 %v449
        %v1094 = vunpack.c.l.b16 %v450
        %v1095 = vunpack.c.h.b16 %v450
        %v1096 = vunpack.c.l.b16 %v451
        %v1097 = vunpack.c.h.b16 %v451
        %v1098 = vunpack.c.l.b16 %v452
        %v1099 = vunpack.c.h.b16 %v452
        %v1100 = vunpack.c.l.b16 %v453
        %v1101 = vunpack.c.h.b16 %v453
        %v1102 = vunpack.c.l.b16 %v454
        %v1103 = vunpack.c.h.b16 %v454
        %v1104 = vunpack.c.l.b16 %v455
        %v1105 = vunpack.c.h.b16 %v455
        %v1106 = vunpack.c.l.b16 %v456
        %v1107 = vunpack.c.h.b16 %v456
        %v1108 = vunpack.c.l.b16 %v457
        %v1109 = vunpack.c.h.b16 %v457
        %v1110 = vunpack.c.l.b16 %v458
        %v1111 = vunpack.c.h.b16 %v458
        %v1112 = vunpack.c.l.b16 %v459
        %v1113 = vunpack.c.h.b16 %v459
        %v1114 = vunpack.c.l.b16 %v460
        %v1115 = vunpack.c.h.b16 %v460
        %v1116 = vunpack.c.l.b16 %v461
        %v1117 = vunpack.c.h.b16 %v461
        %v1118 = vunpack.c.l.b16 %v462
        %v1119 = vunpack.c.h.b16 %v462
        %v1120 = vunpack.c.l.b16 %v463
        %v1121 = vunpack.c.h.b16 %v463
        %v1122 = vunpack.c.l.b16 %v464
        %v1123 = vunpack.c.h.b16 %v464
        %v1124 = vunpack.c.l.b16 %v465
        %v1125 = vunpack.c.h.b16 %v465
        %v1126 = vunpack.c.l.b16 %v466
        %v1127 = vunpack.c.h.b16 %v466
        %v1128 = vunpack.c.l.b16 %v467
        %v1129 = vunpack.c.h.b16 %v467
        %v1130 = vunpack.c.l.b16 %v468
        %v1131 = vunpack.c.h.b16 %v468
        %v1132 = vunpack.c.l.b16 %v469
        %v1133 = vunpack.c.h.b16 %v469
        %v1134 = vunpack.c.l.b16 %v470
        %v1135 = vunpack.c.h.b16 %v470
        %v1136 = vunpack.c.l.b16 %v471
        %v1137 = vunpack.c.h.b16 %v471
        %v1138 = vunpack.c.l.b16 %v472
        %v1139 = vunpack.c.h.b16 %v472
        %v1140 = vunpack.c.l.b16 %v473
        %v1141 = vunpack.c.h.b16 %v473
        %v1142 = vunpack.c.l.b16 %v474
        %v1143 = vunpack.c.h.b16 %v474
        %v1144 = vunpack.c.l.b16 %v475
        %v1145 = vunpack.c.h.b16 %v475
        %v1146 = vunpack.c.l.b16 %v476
        %v1147 = vunpack.c.h.b16 %v476
        %v1148 = vunpack.c.l.b16 %v477
        %v1149 = vunpack.c.h.b16 %v477
        %v1150 = vunpack.c.l.b16 %v478
        %v1151 = vunpack.c.h.b16 %v478
        %v1152 = vunpack.c.l.b16 %v479
        %v1153 = vunpack.c.h.b16 %v479
        %v1154 = vunpack.c.l.b16 %v480
        %v1155 = vunpack.c.h.b16 %v480
        %v1156 = vunpack.c.l.b16 %v481
        %v1157 = vunpack.c.h.b16 %v481
        %v1158 = vunpack.c.l.b16 %v482
        %v1159 = vunpack.c.h.b16 %v482
        %v1160 = vunpack.c.l.b16 %v483
        %v1161 = vunpack.c.h.b16 %v483
        %v1162 = vunpack.c.l.b16 %v484
        %v1163 = vunpack.c.h.b16 %v484
        %v1164 = vunpack.c.l.b16 %v485
        %v1165 = vunpack.c.h.b16 %v485
        %v1166 = vunpack.c.l.b16 %v486
        %v1167 = vunpack.c.h.b16 %v486
        %v1168 = vunpack.c.l.b16 %v487
        %v1169 = vunpack.c.h.b16 %v487
        %v1170 = vunpack.c.l.b16 %v488
        %v1171 = vunpack.c.h.b16 %v488
        %v1172 = vunpack.c.l.b16 %v489
        %v1173 = vunpack.c.h.b16 %v489
        %v1174 = vunpack.c.l.b16 %v490
        %v1175 = vunpack.c.h.b16 %v490
        %v1176 = vunpack.c.l.b16 %v491
        %v1177 = vunpack.c.h.b16 %v491
        %v1178 = vunpack.c.l.b16 %v492
        %v1179 = vunpack.c.h.b16 %v492
        %v1180 = vunpack.c.l.b16 %v493
        %v1181 = vunpack.c.h.b16 %v493
        %v1182 = vunpack.c.l.b16 %v494
        %v1183 = vunpack.c.h.b16 %v494
        %v1184 = vunpack.c.l.b16 %v495
        %v1185 = vunpack.c.h.b16 %v495
        %v1186 = vunpack.c.l.b16 %v496
        %v1187 = vunpack.c.h.b16 %v496
        %v1188 = vunpack.c.l.b16 %v497
        %v1189 = vunpack.c.h.b16 %v497
        %v1190 = vunpack.c.l.b16 %v498
        %v1191 = vunpack.c.h.b16 %v498
        %v1192 = vunpack.c.l.b16 %v499
        %v1193 = vunpack.c.h.b16 %v499
        %v1194 = vunpack.c.l.b16 %v500
        %v1195 = vunpack.c.h.b16 %v500
        %v1196 = vunpack.c.l.b16 %v501
        %v1197 = vunpack.c.h.b16 %v501
        %v1198 = vunpack.c.l.b16 %v502
        %v1199 = vunpack.c.h.b16 %v502
        %v1200 = vunpack.c.l.b16 %v503
        %v1201 = vunpack.c.h.b16 %v503
        %v1202 = vunpack.c.l.b16 %v504
        %v1203 = vunpack.c.h.b16 %v504
        %v1204 = vunpack.c.l.b16 %v505
        %v1205 = vunpack.c.h.b16 %v505
        %v1206 = vunpack.c.l.b16 %v506
        %v1207 = vunpack.c.h.b16 %v506
        %v1208 = vunpack.c.l.b16 %v507
        %v1209 = vunpack.c.h.b16 %v507
        %v1210 = vunpack.c.l.b16 %v508
        %v1211 = vunpack.c.h.b16 %v508
        %v1212 = vunpack.c.l.b16 %v509
        %v1213 = vunpack.c.h.b16 %v509
        %v1214 = vunpack.c.l.b16 %v510
        %v1215 = vunpack.c.h.b16 %v510
        %v1216 = vunpack.c.l.b16 %v511
        %v1217 = vunpack.c.h.b16 %v511
        %v1218 = vunpack.c.l.b16 %v512
        %v1219 = vunpack.c.h.b16 %v512
        %v1220 = vunpack.c.l.b16 %v513
        %v1221 = vunpack.c.h.b16 %v513
        %v1222 = vunpack.c.l.b16 %v514
        %v1223 = vunpack.c.h.b16 %v514
        %v1224 = vunpack.c.l.b16 %v515
        %v1225 = vunpack.c.h.b16 %v515
        %v1226 = vunpack.c.l.b16 %v516
        %v1227 = vunpack.c.h.b16 %v516
        %v1228 = vunpack.c.l.b16 %v517
        %v1229 = vunpack.c.h.b16 %v517
        %v1230 = vunpack.c.l.b16 %v518
        %v1231 = vunpack.c.h.b16 %v518
        %v1232 = vunpack.c.l.b16 %v519
        %v1233 = vunpack.c.h.b16 %v519
        %v1234 = vunpack.c.l.b16 %v520
        %v1235 = vunpack.c.h.b16 %v520
        %v1236 = vunpack.c.l.b16 %v521
        %v1237 = vunpack.c.h.b16 %v521
        %v1238 = vunpack.c.l.b16 %v522
        %v1239 = vunpack.c.h.b16 %v522
        %v1240 = vunpack.c.l.b16 %v523
        %v1241 = vunpack.c.h.b16 %v523
        %v1242 = vunpack.c.l.b16 %v524
        %v1243 = vunpack.c.h.b16 %v524
        %v1244 = vunpack.c.l.b16 %v525
        %v1245 = vunpack.c.h.b16 %v525
        %v1246 = vunpack.c.l.b16 %v526
        %v1247 = vunpack.c.h.b16 %v526
        %v1248 = vunpack.c.l.b16 %v527
        %v1249 = vunpack.c.h.b16 %v527
        %v1250 = vunpack.c.l.b16 %v528
        %v1251 = vunpack.c.h.b16 %v528
        %v1252 = vunpack.c.l.b16 %v529
        %v1253 = vunpack.c.h.b16 %v529
        %v1254 = vunpack.c.l.b16 %v530
        %v1255 = vunpack.c.h.b16 %v530
        %v1256 = vunpack.c.l.b16 %v531
        %v1257 = vunpack.c.h.b16 %v531
        %v1258 = vunpack.c.l.b16 %v532
        %v1259 = vunpack.c.h.b16 %v532
        %v1260 = vunpack.c.l.b16 %v533
        %v1261 = vunpack.c.h.b16 %v533
        %v1262 = vunpack.c.l.b16 %v534
        %v1263 = vunpack.c.h.b16 %v534
        %v1264 = vunpack.c.l.b16 %v535
        %v1265 = vunpack.c.h.b16 %v535
        %v1266 = vunpack.c.l.b16 %v536
        %v1267 = vunpack.c.h.b16 %v536
        %v1268 = vunpack.c.l.b16 %v537
        %v1269 = vunpack.c.h.b16 %v537
        %v1270 = vunpack.c.l.b16 %v538
        %v1271 = vunpack.c.h.b16 %v538
        %v1272 = vunpack.c.l.b16 %v539
        %v1273 = vunpack.c.h.b16 %v539
        %v1274 = vunpack.c.l.b16 %v540
        %v1275 = vunpack.c.h.b16 %v540
        %v1276 = vunpack.c.l.b16 %v541
        %v1277 = vunpack.c.h.b16 %v541
        %v1278 = vunpack.c.l.b16 %v542
        %v1279 = vunpack.c.h.b16 %v542
        %v1280 = vunpack.c.l.b16 %v543
        %v1281 = vunpack.c.h.b16 %v543
        %v1282 = vunpack.c.l.b16 %v544
        %v1283 = vunpack.c.h.b16 %v544
        %v1284 = vunpack.c.l.b16 %v545
        %v1285 = vunpack.c.h.b16 %v545
        %v1286 = vunpack.c.l.b16 %v546
        %v1287 = vunpack.c.h.b16 %v546
        %v1288 = vunpack.c.l.b16 %v547
        %v1289 = vunpack.c.h.b16 %v547
        %v1290 = vunpack.c.l.b16 %v548
        %v1291 = vunpack.c.h.b16 %v548
        %v1292 = vunpack.c.l.b16 %v549
        %v1293 = vunpack.c.h.b16 %v549
        %v1294 = vunpack.c.l.b16 %v550
        %v1295 = vunpack.c.h.b16 %v550
        %v1296 = vunpack.c.l.b16 %v551
        %v1297 = vunpack.c.h.b16 %v551
        %v1298 = vunpack.c.l.b16 %v552
        %v1299 = vunpack.c.h.b16 %v552
        %v1300 = vunpack.c.l.b16 %v553
        %v1301 = vunpack.c.h.b16 %v553
        %v1302 = vunpack.c.l.b16 %v554
        %v1303 = vunpack.c.h.b16 %v554
        %v1304 = vunpack.c.l.b16 %v555
        %v1305 = vunpack.c.h.b16 %v555
        %v1306 = vunpack.c.l.b16 %v556
        %v1307 = vunpack.c.h.b16 %v556
        %v1308 = vunpack.c.l.b16 %v557
        %v1309 = vunpack.c.h.b16 %v557
        %v1310 = vunpack.c.l.b16 %v558
        %v1311 = vunpack.c.h.b16 %v558
        %v1312 = vunpack.c.l.b16 %v559
        %v1313 = vunpack.c.h.b16 %v559
        %v1314 = vunpack.c.l.b16 %v560
        %v1315 = vunpack.c.h.b16 %v560
        %v1316 = vunpack.c.l.b16 %v561
        %v1317 = vunpack.c.h.b16 %v561
        %v1318 = vunpack.c.l.b16 %v562
        %v1319 = vunpack.c.h.b16 %v562
        %v1320 = vunpack.c.l.b16 %v563
        %v1321 = vunpack.c.h.b16 %v563
        %v1322 = vunpack.c.l.b16 %v564
        %v1323 = vunpack.c.h.b16 %v564
        %v1324 = vunpack.c.l.b16 %v565
        %v1325 = vunpack.c.h.b16 %v565
        %v1326 = vunpack.c.l.b16 %v566
        %v1327 = vunpack.c.h.b16 %v566
        %v1328 = vunpack.c.l.b16 %v567
        %v1329 = vunpack.c.h.b16 %v567
        %v1330 = vunpack.c.l.b16 %v568
        %v1331 = vunpack.c.h.b16 %v568
        %v1332 = vunpack.c.l.b16 %v569
        %v1333 = vunpack.c.h.b16 %v569
        %v1334 = vunpack.c.l.b16 %v570
        %v1335 = vunpack.c.h.b16 %v570
        %v1336 = vunpack.c.l.b16 %v571
        %v1337 = vunpack.c.h.b16 %v571
        %v1338 = vunpack.c.l.b16 %v572
        %v1339 = vunpack.c.h.b16 %v572
        %v1340 = vunpack.c.l.b16 %v573
        %v1341 = vunpack.c.h.b16 %v573
        %v1342 = vunpack.c.l.b16 %v574
        %v1343 = vunpack.c.h.b16 %v574
        %v1344 = vunpack.c.l.b16 %v575
        %v1345 = vunpack.c.h.b16 %v575
        %v1346 = vunpack.c.l.b16 %v576
        %v1347 = vunpack.c.h.b16 %v576
        %v1348 = vunpack.c.l.b16 %v577
        %v1349 = vunpack.c.h.b16 %v577
        %v1350 = vunpack.c.l.b16 %v578
        %v1351 = vunpack.c.h.b16 %v578
        %v1352 = vunpack.c.l.b16 %v579
        %v1353 = vunpack.c.h.b16 %v579
        %v1354 = vunpack.c.l.b16 %v580
        %v1355 = vunpack.c.h.b16 %v580
        %v1356 = vunpack.c.l.b16 %v581
        %v1357 = vunpack.c.h.b16 %v581
        %v1358 = vunpack.c.l.b16 %v582
        %v1359 = vunpack.c.h.b16 %v582
        %v1360 = vunpack.c.l.b16 %v583
        %v1361 = vunpack.c.h.b16 %v583
        %v1362 = vunpack.c.l.b16 %v584
        %v1363 = vunpack.c.h.b16 %v584
        %v1364 = vunpack.c.l.b16 %v585
        %v1365 = vunpack.c.h.b16 %v585
        %v1366 = vunpack.c.l.b16 %v586
        %v1367 = vunpack.c.h.b16 %v586
        %v1368 = vunpack.c.l.b16 %v587
        %v1369 = vunpack.c.h.b16 %v587
        %v1370 = vunpack.c.l.b16 %v588
        %v1371 = vunpack.c.h.b16 %v588
        %v1372 = vunpack.c.l.b16 %v589
        %v1373 = vunpack.c.h.b16 %v589
        %v1374 = vunpack.c.l.b16 %v590
        %v1375 = vunpack.c.h.b16 %v590
        %v1376 = vunpack.c.l.b16 %v591
        %v1377 = vunpack.c.h.b16 %v591
        %v1378 = vunpack.c.l.b16 %v592
        %v1379 = vunpack.c.h.b16 %v592
        %v1380 = vunpack.c.l.b16 %v593
        %v1381 = vunpack.c.h.b16 %v593
        %v1382 = vunpack.c.l.b16 %v594
        %v1383 = vunpack.c.h.b16 %v594
        %v1384 = vunpack.c.l.b16 %v595
        %v1385 = vunpack.c.h.b16 %v595
        %v1386 = vunpack.c.l.b16 %v596
        %v1387 = vunpack.c.h.b16 %v596
        %v1388 = vunpack.c.l.b16 %v597
        %v1389 = vunpack.c.h.b16 %v597
        %v1390 = vunpack.c.l.b16 %v598
        %v1391 = vunpack.c.h.b16 %v598
        %v1392 = vunpack.c.l.b16 %v599
        %v1393 = vunpack.c.h.b16 %v599
        %v1394 = vunpack.c.l.b16 %v600
        %v1395 = vunpack.c.h.b16 %v600
        %v1396 = vunpack.c.l.b16 %v601
        %v1397 = vunpack.c.h.b16 %v601
        %v1398 = vpack.c.b16 %v890, %v886
        %v1399 = vpack.c.b16 %v891, %v887
        %v1400 = vpack.c.b16 %v892, %v888
        %v1401 = vpack.c.b16 %v893, %v889
        %v1402 = vpack.c.b16 %v898, %v894
        %v1403 = vpack.c.b16 %v899, %v895
        %v1404 = vpack.c.b16 %v900, %v896
        %v1405 = vpack.c.b16 %v901, %v897
        %v1406 = vpack.c.b16 %v906, %v902
        %v1407 = vpack.c.b16 %v907, %v903
        %v1408 = vpack.c.b16 %v908, %v904
        %v1409 = vpack.c.b16 %v909, %v905
        %v1410 = vpack.c.b16 %v914, %v910
        %v1411 = vpack.c.b16 %v915, %v911
        %v1412 = vpack.c.b16 %v916, %v912
        %v1413 = vpack.c.b16 %v917, %v913
        %v1414 = vpack.c.b16 %v922, %v918
        %v1415 = vpack.c.b16 %v923, %v919
        %v1416 = vpack.c.b16 %v924, %v920
        %v1417 = vpack.c.b16 %v925, %v921
        %v1418 = vpack.c.b16 %v930, %v926
        %v1419 = vpack.c.b16 %v931, %v927
        %v1420 = vpack.c.b16 %v932, %v928
        %v1421 = vpack.c.b16 %v933, %v929
        %v1422 = vpack.c.b16 %v938, %v934
        %v1423 = vpack.c.b16 %v939, %v935
        %v1424 = vpack.c.b16 %v940, %v936
        %v1425 = vpack.c.b16 %v941, %v937
        %v1426 = vpack.c.b16 %v946, %v942
        %v1427 = vpack.c.b16 %v947, %v943
        %v1428 = vpack.c.b16 %v948, %v944
        %v1429 = vpack.c.b16 %v949, %v945
        %v1430 = vpack.c.b16 %v954, %v950
        %v1431 = vpack.c.b16 %v955, %v951
        %v1432 = vpack.c.b16 %v956, %v952
        %v1433 = vpack.c.b16 %v957, %v953
        %v1434 = vpack.c.b16 %v962, %v958
        %v1435 = vpack.c.b16 %v963, %v959
        %v1436 = vpack.c.b16 %v964, %v960
        %v1437 = vpack.c.b16 %v965, %v961
        %v1438 = vpack.c.b16 %v970, %v966
        %v1439 = vpack.c.b16 %v971, %v967
        %v1440 = vpack.c.b16 %v972, %v968
        %v1441 = vpack.c.b16 %v973, %v969
        %v1442 = vpack.c.b16 %v978, %v974
        %v1443 = vpack.c.b16 %v979, %v975
        %v1444 = vpack.c.b16 %v980, %v976
        %v1445 = vpack.c.b16 %v981, %v977
        %v1446 = vpack.c.b16 %v986, %v982
        %v1447 = vpack.c.b16 %v987, %v983
        %v1448 = vpack.c.b16 %v988, %v984
        %v1449 = vpack.c.b16 %v989, %v985
        %v1450 = vpack.c.b16 %v994, %v990
        %v1451 = vpack.c.b16 %v995, %v991
        %v1452 = vpack.c.b16 %v996, %v992
        %v1453 = vpack.c.b16 %v997, %v993
        %v1454 = vpack.c.b16 %v1002, %v998
        %v1455 = vpack.c.b16 %v1003, %v999
        %v1456 = vpack.c.b16 %v1004, %v1000
        %v1457 = vpack.c.b16 %v1005, %v1001
        %v1458 = vpack.c.b16 %v1010, %v1006
        %v1459 = vpack.c.b16 %v1011, %v1007
        %v1460 = vpack.c.b16 %v1012, %v1008
        %v1461 = vpack.c.b16 %v1013, %v1009
        %v1462 = vpack.c.b16 %v1018, %v1014
        %v1463 = vpack.c.b16 %v1019, %v1015
        %v1464 = vpack.c.b16 %v1020, %v1016
        %v1465 = vpack.c.b16 %v1021, %v1017
        %v1466 = vpack.c.b16 %v1026, %v1022
        %v1467 = vpack.c.b16 %v1027, %v1023
        %v1468 = vpack.c.b16 %v1028, %v1024
        %v1469 = vpack.c.b16 %v1029, %v1025
        %v1470 = vpack.c.b16 %v1034, %v1030
        %v1471 = vpack.c.b16 %v1035, %v1031
        %v1472 = vpack.c.b16 %v1036, %v1032
        %v1473 = vpack.c.b16 %v1037, %v1033
        %v1474 = vpack.c.b16 %v1042, %v1038
        %v1475 = vpack.c.b16 %v1043, %v1039
        %v1476 = vpack.c.b16 %v1044, %v1040
        %v1477 = vpack.c.b16 %v1045, %v1041
        %v1478 = vpack.c.b16 %v1050, %v1046
        %v1479 = vpack.c.b16 %v1051, %v1047
        %v1480 = vpack.c.b16 %v1052, %v1048
        %v1481 = vpack.c.b16 %v1053, %v1049
        %v1482 = vpack.c.b16 %v1058, %v1054
        %v1483 = vpack.c.b16 %v1059, %v1055
        %v1484 = vpack.c.b16 %v1060, %v1056
        %v1485 = vpack.c.b16 %v1061, %v1057
        %v1486 = vpack.c.b16 %v1066, %v1062
        %v1487 = vpack.c.b16 %v1067, %v1063
        %v1488 = vpack.c.b16 %v1068, %v1064
        %v1489 = vpack.c.b16 %v1069, %v1065
        %v1490 = vpack.c.b16 %v1074, %v1070
        %v1491 = vpack.c.b16 %v1075, %v1071
        %v1492 = vpack.c.b16 %v1076, %v1072
        %v1493 = vpack.c.b16 %v1077, %v1073
        %v1494 = vpack.c.b16 %v1082, %v1078
        %v1495 = vpack.c.b16 %v1083, %v1079
        %v1496 = vpack.c.b16 %v1084, %v1080
        %v1497 = vpack.c.b16 %v1085, %v1081
        %v1498 = vpack.c.b16 %v1090, %v1086
        %v1499 = vpack.c.b16 %v1091, %v1087
        %v1500 = vpack.c.b16 %v1092, %v1088
        %v1501 = vpack.c.b16 %v1093, %v1089
        %v1502 = vpack.c.b16 %v1098, %v1094
        %v1503 = vpack.c.b16 %v1099, %v1095
        %v1504 = vpack.c.b16 %v1100, %v1096
        %v1505 = vpack.c.b16 %v1101, %v1097
        %v1506 = vpack.c.b16 %v1106, %v1102
        %v1507 = vpack.c.b16 %v1107, %v1103
        %v1508 = vpack.c.b16 %v1108, %v1104
        %v1509 = vpack.c.b16 %v1109, %v1105
        %v1510 = vpack.c.b16 %v1114, %v1110
        %v1511 = vpack.c.b16 %v1115, %v1111
        %v1512 = vpack.c.b16 %v1116, %v1112
        %v1513 = vpack.c.b16 %v1117, %v1113
        %v1514 = vpack.c.b16 %v1122, %v1118
        %v1515 = vpack.c.b16 %v1123, %v1119
        %v1516 = vpack.c.b16 %v1124, %v1120
        %v1517 = vpack.c.b16 %v1125, %v1121
        %v1518 = vpack.c.b16 %v1130, %v1126
        %v1519 = vpack.c.b16 %v1131, %v1127
        %v1520 = vpack.c.b16 %v1132, %v1128
        %v1521 = vpack.c.b16 %v1133, %v1129
        %v1522 = vpack.c.b16 %v1138, %v1134
        %v1523 = vpack.c.b16 %v1139, %v1135
        %v1524 = vpack.c.b16 %v1140, %v1136
        %v1525 = vpack.c.b16 %v1141, %v1137
        %v1526 = vpack.c.b16 %v1146, %v1142
        %v1527 = vpack.c.b16 %v1147, %v1143
        %v1528 = vpack.c.b16 %v1148, %v1144
        %v1529 = vpack.c.b16 %v1149, %v1145
        %v1530 = vpack.c.b16 %v1154, %v1150
        %v1531 = vpack.c.b16 %v1155, %v1151
        %v1532 = vpack.c.b16 %v1156, %v1152
        %v1533 = vpack.c.b16 %v1157, %v1153
        %v1534 = vpack.c.b16 %v1162, %v1158
        %v1535 = vpack.c.b16 %v1163, %v1159
        %v1536 = vpack.c.b16 %v1164, %v1160
        %v1537 = vpack.c.b16 %v1165, %v1161
        %v1538 = vpack.c.b16 %v1170, %v1166
        %v1539 = vpack.c.b16 %v1171, %v1167
        %v1540 = vpack.c.b16 %v1172, %v1168
        %v1541 = vpack.c.b16 %v1173, %v1169
        %v1542 = vpack.c.b16 %v1178, %v1174
        %v1543 = vpack.c.b16 %v1179, %v1175
        %v1544 = vpack.c.b16 %v1180, %v1176
        %v1545 = vpack.c.b16 %v1181, %v1177
        %v1546 = vpack.c.b16 %v1186, %v1182
        %v1547 = vpack.c.b16 %v1187, %v1183
        %v1548 = vpack.c.b16 %v1188, %v1184
        %v1549 = vpack.c.b16 %v1189, %v1185
        %v1550 = vpack.c.b16 %v1194, %v1190
        %v1551 = vpack.c.b16 %v1195, %v1191
        %v1552 = vpack.c.b16 %v1196, %v1192
        %v1553 = vpack.c.b16 %v1197, %v1193
        %v1554 = vpack.c.b16 %v1202, %v1198
        %v1555 = vpack.c.b16 %v1203, %v1199
        %v1556 = vpack.c.b16 %v1204, %v1200
        %v1557 = vpack.c.b16 %v1205, %v1201
        %v1558 = vpack.c.b16 %v1210, %v1206
        %v1559 = vpack.c.b16 %v1211, %v1207
        %v1560 = vpack.c.b16 %v1212, %v1208
        %v1561 = vpack.c.b16 %v1213, %v1209
        %v1562 = vpack.c.b16 %v1218, %v1214
        %v1563 = vpack.c.b16 %v1219, %v1215
        %v1564 = vpack.c.b16 %v1220, %v1216
        %v1565 = vpack.c.b16 %v1221, %v1217
        %v1566 = vpack.c.b16 %v1226, %v1222
        %v1567 = vpack.c.b16 %v1227, %v1223
        %v1568 = vpack.c.b16 %v1228, %v1224
        %v1569 = vpack.c.b16 %v1229, %v1225
        %v1570 = vpack.c.b16 %v1234, %v1230
        %v1571 = vpack.c.b16 %v1235, %v1231
        %v1572 = vpack.c.b16 %v1236, %v1232
        %v1573 = vpack.c.b16 %v1237, %v1233
        %v1574 = vpack.c.b16 %v1242, %v1238
        %v1575 = vpack.c.b16 %v1243, %v1239
        %v1576 = vpack.c.b16 %v1244, %v1240
        %v1577 = vpack.c.b16 %v1245, %v1241
        %v1578 = vpack.c.b16 %v1250, %v1246
        %v1579 = vpack.c.b16 %v1251, %v1247
        %v1580 = vpack.c.b16 %v1252, %v1248
        %v1581 = vpack.c.b16 %v1253, %v1249
        %v1582 = vpack.c.b16 %v1258, %v1254
        %v1583 = vpack.c.b16 %v1259, %v1255
        %v1584 = vpack.c.b16 %v1260, %v1256
        %v1585 = vpack.c.b16 %v1261, %v1257
        %v1586 = vpack.c.b16 %v1266, %v1262
        %v1587 = vpack.c.b16 %v1267, %v1263
        %v1588 = vpack.c.b16 %v1268, %v1264
        %v1589 = vpack.c.b16 %v1269, %v1265
        %v1590 = vpack.c.b16 %v1274, %v1270
        %v1591 = vpack.c.b16 %v1275, %v1271
        %v1592 = vpack.c.b16 %v1276, %v1272
        %v1593 = vpack.c.b16 %v1277, %v1273
        %v1594 = vpack.c.b16 %v1282, %v1278
        %v1595 = vpack.c.b16 %v1283, %v1279
        %v1596 = vpack.c.b16 %v1284, %v1280
        %v1597 = vpack.c.b16 %v1285, %v1281
        %v1598 = vpack.c.b16 %v1290, %v1286
        %v1599 = vpack.c.b16 %v1291, %v1287
        %v1600 = vpack.c.b16 %v1292, %v1288
        %v1601 = vpack.c.b16 %v1293, %v1289
        %v1602 = vpack.c.b16 %v1298, %v1294
        %v1603 = vpack.c.b16 %v1299, %v1295
        %v1604 = vpack.c.b16 %v1300, %v1296
        %v1605 = vpack.c.b16 %v1301, %v1297
        %v1606 = vpack.c.b16 %v1306, %v1302
        %v1607 = vpack.c.b16 %v1307, %v1303
        %v1608 = vpack.c.b16 %v1308, %v1304
        %v1609 = vpack.c.b16 %v1309, %v1305
        %v1610 = vpack.c.b16 %v1314, %v1310
        %v1611 = vpack.c.b16 %v1315, %v1311
        %v1612 = vpack.c.b16 %v1316, %v1312
        %v1613 = vpack.c.b16 %v1317, %v1313
        %v1614 = vpack.c.b16 %v1322, %v1318
        %v1615 = vpack.c.b16 %v1323, %v1319
        %v1616 = vpack.c.b16 %v1324, %v1320
        %v1617 = vpack.c.b16 %v1325, %v1321
        %v1618 = vpack.c.b16 %v1330, %v1326
        %v1619 = vpack.c.b16 %v1331, %v1327
        %v1620 = vpack.c.b16 %v1332, %v1328
        %v1621 = vpack.c.b16 %v1333, %v1329
        %v1622 = vpack.c.b16 %v1338, %v1334
        %v1623 = vpack.c.b16 %v1339, %v1335
        %v1624 = vpack.c.b16 %v1340, %v1336
        %v1625 = vpack.c.b16 %v1341, %v1337
        %v1626 = vpack.c.b16 %v1346, %v1342
        %v1627 = vpack.c.b16 %v1347, %v1343
        %v1628 = vpack.c.b16 %v1348, %v1344
        %v1629 = vpack.c.b16 %v1349, %v1345
        %v1630 = vpack.c.b16 %v1354, %v1350
        %v1631 = vpack.c.b16 %v1355, %v1351
        %v1632 = vpack.c.b16 %v1356, %v1352
        %v1633 = vpack.c.b16 %v1357, %v1353
        %v1634 = vpack.c.b16 %v1362, %v1358
        %v1635 = vpack.c.b16 %v1363, %v1359
        %v1636 = vpack.c.b16 %v1364, %v1360
        %v1637 = vpack.c.b16 %v1365, %v1361
        %v1638 = vpack.c.b16 %v1370, %v1366
        %v1639 = vpack.c.b16 %v1371, %v1367
        %v1640 = vpack.c.b16 %v1372, %v1368
        %v1641 = vpack.c.b16 %v1373, %v1369
        %v1642 = vpack.c.b16 %v1378, %v1374
        %v1643 = vpack.c.b16 %v1379, %v1375
        %v1644 = vpack.c.b16 %v1380, %v1376
        %v1645 = vpack.c.b16 %v1381, %v1377
        %v1646 = vpack.c.b16 %v1386, %v1382
        %v1647 = vpack.c.b16 %v1387, %v1383
        %v1648 = vpack.c.b16 %v1388, %v1384
        %v1649 = vpack.c.b16 %v1389, %v1385
        %v1650 = vpack.c.b16 %v1394, %v1390
        %v1651 = vpack.c.b16 %v1395, %v1391
        %v1652 = vpack.c.b16 %v1396, %v1392
        %v1653 = vpack.c.b16 %v1397, %v1393
        %1910 = vmatprep.subr.bf16.mxu0 %v1399
        %1911 = vmatpush1.bf16.msra.mxu0 %v1398
        %1912 = vmatprep.subr.bf16.mxu0 %v1403
        %1913 = vmatpush1.bf16.msra.mxu0 %v1402
        %1914 = vmatprep.subr.bf16.mxu0 %v1407
        %1915 = vmatpush1.bf16.msra.mxu0 %v1406
        %1916 = vmatprep.subr.bf16.mxu0 %v1411
        %1917 = vmatpush1.bf16.msra.mxu0 %v1410
        %1918 = vmatprep.subr.bf16.mxu0 %v1415
        %1919 = vmatpush1.bf16.msra.mxu0 %v1414
        %1920 = vmatprep.subr.bf16.mxu0 %v1419
        %1921 = vmatpush1.bf16.msra.mxu0 %v1418
        %1922 = vmatprep.subr.bf16.mxu0 %v1423
        %1923 = vmatpush1.bf16.msra.mxu0 %v1422
        %1924 = vmatprep.subr.bf16.mxu0 %v1427
        %1925 = vmatpush1.bf16.msra.mxu0 %v1426
        %1926 = vmatprep.subr.bf16.mxu0 %v1431
        %1927 = vmatpush1.bf16.msra.mxu0 %v1430
        %1928 = vmatprep.subr.bf16.mxu0 %v1435
        %1929 = vmatpush1.bf16.msra.mxu0 %v1434
        %1930 = vmatprep.subr.bf16.mxu0 %v1439
        %1931 = vmatpush1.bf16.msra.mxu0 %v1438
        %1932 = vmatprep.subr.bf16.mxu0 %v1443
        %1933 = vmatpush1.bf16.msra.mxu0 %v1442
        %1934 = vmatprep.subr.bf16.mxu0 %v1447
        %1935 = vmatpush1.bf16.msra.mxu0 %v1446
        %1936 = vmatprep.subr.bf16.mxu0 %v1451
        %1937 = vmatpush1.bf16.msra.mxu0 %v1450
        %1938 = vmatprep.subr.bf16.mxu0 %v1455
        %1939 = vmatpush1.bf16.msra.mxu0 %v1454
        %1940 = vmatprep.subr.bf16.mxu0 %v1459
        %1941 = vmatpush1.bf16.msra.mxu0 %v1458
        %1942 = vmatprep.mubr.bf16.mxu0 %v615
        %1943 = vmatmul.mubr.bf16.gmra.mrb[0].mxu0 %v614
        %v1944 = vpop.f32.mrb[0].mxu0
        %v1945 = vadd.f32 0.0, %v1944
        %v1946 = vpop.f32.mrb[0].mxu0
        %v1947 = vadd.f32 0.0, %v1946
        %v1948 = vpop.f32.mrb[0].mxu0
        %v1949 = vpop.f32.mrb[0].mxu0
        %1950 = vdwg.mxu0
        %1951 = vmatprep.subr.bf16.mxu0 %v1463
        %1952 = vmatpush1.bf16.msra.mxu0 %v1462
        %1953 = vmatprep.subr.bf16.mxu0 %v1467
        %1954 = vmatpush1.bf16.msra.mxu0 %v1466
        %1955 = vmatprep.subr.bf16.mxu0 %v1471
        %1956 = vmatpush1.bf16.msra.mxu0 %v1470
        %1957 = vmatprep.subr.bf16.mxu0 %v1475
        %1958 = vmatpush1.bf16.msra.mxu0 %v1474
        %1959 = vmatprep.subr.bf16.mxu0 %v1479
        %1960 = vmatpush1.bf16.msra.mxu0 %v1478
        %1961 = vmatprep.subr.bf16.mxu0 %v1483
        %1962 = vmatpush1.bf16.msra.mxu0 %v1482
        %1963 = vmatprep.subr.bf16.mxu0 %v1487
        %1964 = vmatpush1.bf16.msra.mxu0 %v1486
        %1965 = vmatprep.subr.bf16.mxu0 %v1491
        %1966 = vmatpush1.bf16.msra.mxu0 %v1490
        %1967 = vmatprep.subr.bf16.mxu0 %v1495
        %1968 = vmatpush1.bf16.msra.mxu0 %v1494
        %1969 = vmatprep.subr.bf16.mxu0 %v1499
        %1970 = vmatpush1.bf16.msra.mxu0 %v1498
        %1971 = vmatprep.subr.bf16.mxu0 %v1503
        %1972 = vmatpush1.bf16.msra.mxu0 %v1502
        %1973 = vmatprep.subr.bf16.mxu0 %v1507
        %1974 = vmatpush1.bf16.msra.mxu0 %v1506
        %1975 = vmatprep.subr.bf16.mxu0 %v1511
        %1976 = vmatpush1.bf16.msra.mxu0 %v1510
        %1977 = vmatprep.subr.bf16.mxu0 %v1515
        %1978 = vmatpush1.bf16.msra.mxu0 %v1514
        %1979 = vmatprep.subr.bf16.mxu0 %v1519
        %1980 = vmatpush1.bf16.msra.mxu0 %v1518
        %1981 = vmatprep.subr.bf16.mxu0 %v1523
        %1982 = vmatpush1.bf16.msra.mxu0 %v1522
        %1983 = vmatprep.mubr.bf16.mxu0 %v617
        %1984 = vmatmul.mubr.bf16.gmra.mrb[0].mxu0 %v616
        %v1985 = vpop.f32.mrb[0].mxu0
        %v1986 = vadd.f32 %v1945, %v1985
        %v1987 = vpop.f32.mrb[0].mxu0
        %v1988 = vadd.f32 %v1947, %v1987
        %v1989 = vpop.f32.mrb[0].mxu0
        %v1990 = vpop.f32.mrb[0].mxu0
        %1991 = vdwg.mxu0
        %1992 = vmatprep.subr.bf16.mxu0 %v1527
        %1993 = vmatpush1.bf16.msra.mxu0 %v1526
        %1994 = vmatprep.subr.bf16.mxu0 %v1531
        %1995 = vmatpush1.bf16.msra.mxu0 %v1530
        %1996 = vmatprep.subr.bf16.mxu0 %v1535
        %1997 = vmatpush1.bf16.msra.mxu0 %v1534
        %1998 = vmatprep.subr.bf16.mxu0 %v1539
        %1999 = vmatpush1.bf16.msra.mxu0 %v1538
        %2000 = vmatprep.subr.bf16.mxu0 %v1543
        %2001 = vmatpush1.bf16.msra.mxu0 %v1542
        %2002 = vmatprep.subr.bf16.mxu0 %v1547
        %2003 = vmatpush1.bf16.msra.mxu0 %v1546
        %2004 = vmatprep.subr.bf16.mxu0 %v1551
        %2005 = vmatpush1.bf16.msra.mxu0 %v1550
        %2006 = vmatprep.subr.bf16.mxu0 %v1555
        %2007 = vmatpush1.bf16.msra.mxu0 %v1554
        %2008 = vmatprep.subr.bf16.mxu0 %v1559
        %2009 = vmatpush1.bf16.msra.mxu0 %v1558
        %2010 = vmatprep.subr.bf16.mxu0 %v1563
        %2011 = vmatpush1.bf16.msra.mxu0 %v1562
        %2012 = vmatprep.subr.bf16.mxu0 %v1567
        %2013 = vmatpush1.bf16.msra.mxu0 %v1566
        %2014 = vmatprep.subr.bf16.mxu0 %v1571
        %2015 = vmatpush1.bf16.msra.mxu0 %v1570
        %2016 = vmatprep.subr.bf16.mxu0 %v1575
        %2017 = vmatpush1.bf16.msra.mxu0 %v1574
        %2018 = vmatprep.subr.bf16.mxu0 %v1579
        %2019 = vmatpush1.bf16.msra.mxu0 %v1578
        %2020 = vmatprep.subr.bf16.mxu0 %v1583
        %2021 = vmatpush1.bf16.msra.mxu0 %v1582
        %2022 = vmatprep.subr.bf16.mxu0 %v1587
        %2023 = vmatpush1.bf16.msra.mxu0 %v1586
        %2024 = vmatprep.mubr.bf16.mxu0 %v619
        %2025 = vmatmul.mubr.bf16.gmra.mrb[0].mxu0 %v618
        %v2026 = vpop.f32.mrb[0].mxu0
        %v2027 = vadd.f32 %v1986, %v2026
        %v2028 = vpop.f32.mrb[0].mxu0
        %v2029 = vadd.f32 %v1988, %v2028
        %v2030 = vpop.f32.mrb[0].mxu0
        %v2031 = vpop.f32.mrb[0].mxu0
        %2032 = vdwg.mxu0
        %2033 = vmatprep.subr.bf16.mxu0 %v1591
        %2034 = vmatpush1.bf16.msra.mxu0 %v1590
        %2035 = vmatprep.subr.bf16.mxu0 %v1595
        %2036 = vmatpush1.bf16.msra.mxu0 %v1594
        %2037 = vmatprep.subr.bf16.mxu0 %v1599
        %2038 = vmatpush1.bf16.msra.mxu0 %v1598
        %2039 = vmatprep.subr.bf16.mxu0 %v1603
        %2040 = vmatpush1.bf16.msra.mxu0 %v1602
        %2041 = vmatprep.subr.bf16.mxu0 %v1607
        %2042 = vmatpush1.bf16.msra.mxu0 %v1606
        %2043 = vmatprep.subr.bf16.mxu0 %v1611
        %2044 = vmatpush1.bf16.msra.mxu0 %v1610
        %2045 = vmatprep.subr.bf16.mxu0 %v1615
        %2046 = vmatpush1.bf16.msra.mxu0 %v1614
        %2047 = vmatprep.subr.bf16.mxu0 %v1619
        %2048 = vmatpush1.bf16.msra.mxu0 %v1618
        %2049 = vmatprep.subr.bf16.mxu0 %v1623
        %2050 = vmatpush1.bf16.msra.mxu0 %v1622
        %2051 = vmatprep.subr.bf16.mxu0 %v1627
        %2052 = vmatpush1.bf16.msra.mxu0 %v1626
        %2053 = vmatprep.subr.bf16.mxu0 %v1631
        %2054 = vmatpush1.bf16.msra.mxu0 %v1630
        %2055 = vmatprep.subr.bf16.mxu0 %v1635
        %2056 = vmatpush1.bf16.msra.mxu0 %v1634
        %2057 = vmatprep.subr.bf16.mxu0 %v1639
        %2058 = vmatpush1.bf16.msra.mxu0 %v1638
        %2059 = vmatprep.subr.bf16.mxu0 %v1643
        %2060 = vmatpush1.bf16.msra.mxu0 %v1642
        %2061 = vmatprep.subr.bf16.mxu0 %v1647
        %2062 = vmatpush1.bf16.msra.mxu0 %v1646
        %2063 = vmatprep.subr.bf16.mxu0 %v1651
        %2064 = vmatpush1.bf16.msra.mxu0 %v1650
        %2065 = vmatprep.mubr.bf16.mxu0 %v621
        %2066 = vmatmul.mubr.bf16.gmra.mrb[0].mxu0 %v620
        %v2067 = vpop.f32.mrb[0].mxu0
        %v2068 = vadd.f32 %v2027, %v2067
        %v2069 = vpop.f32.mrb[0].mxu0
        %v2070 = vadd.f32 %v2029, %v2069
        %v2071 = vpop.f32.mrb[0].mxu0
        %v2072 = vpop.f32.mrb[0].mxu0
        %2073 = vdwg.mxu0
        %2074 = vmatprep.subr.bf16.mxu0 %v1401
        %2075 = vmatpush1.bf16.msra.mxu0 %v1400
        %2076 = vmatprep.subr.bf16.mxu0 %v1405
        %2077 = vmatpush1.bf16.msra.mxu0 %v1404
        %2078 = vmatprep.subr.bf16.mxu0 %v1409
        %2079 = vmatpush1.bf16.msra.mxu0 %v1408
        %2080 = vmatprep.subr.bf16.mxu0 %v1413
        %2081 = vmatpush1.bf16.msra.mxu0 %v1412
        %2082 = vmatprep.subr.bf16.mxu0 %v1417
        %2083 = vmatpush1.bf16.msra.mxu0 %v1416
        %2084 = vmatprep.subr.bf16.mxu0 %v1421
        %2085 = vmatpush1.bf16.msra.mxu0 %v1420
        %2086 = vmatprep.subr.bf16.mxu0 %v1425
        %2087 = vmatpush1.bf16.msra.mxu0 %v1424
        %2088 = vmatprep.subr.bf16.mxu0 %v1429
        %2089 = vmatpush1.bf16.msra.mxu0 %v1428
        %2090 = vmatprep.subr.bf16.mxu0 %v1433
        %2091 = vmatpush1.bf16.msra.mxu0 %v1432
        %2092 = vmatprep.subr.bf16.mxu0 %v1437
        %2093 = vmatpush1.bf16.msra.mxu0 %v1436
        %2094 = vmatprep.subr.bf16.mxu0 %v1441
        %2095 = vmatpush1.bf16.msra.mxu0 %v1440
        %2096 = vmatprep.subr.bf16.mxu0 %v1445
        %2097 = vmatpush1.bf16.msra.mxu0 %v1444
        %2098 = vmatprep.subr.bf16.mxu0 %v1449
        %2099 = vmatpush1.bf16.msra.mxu0 %v1448
        %2100 = vmatprep.subr.bf16.mxu0 %v1453
        %2101 = vmatpush1.bf16.msra.mxu0 %v1452
        %2102 = vmatprep.subr.bf16.mxu0 %v1457
        %2103 = vmatpush1.bf16.msra.mxu0 %v1456
        %2104 = vmatprep.subr.bf16.mxu0 %v1461
        %2105 = vmatpush1.bf16.msra.mxu0 %v1460
        %2106 = vmatprep.mubr.bf16.mxu0 %v615
        %2107 = vmatmul.mubr.bf16.gmra.mrb[0].mxu0 %v614
        %v2108 = vpop.f32.mrb[0].mxu0
        %v2109 = vadd.f32 0.0, %v2108
        %v2110 = vpop.f32.mrb[0].mxu0
        %v2111 = vadd.f32 0.0, %v2110
        %v2112 = vpop.f32.mrb[0].mxu0
        %v2113 = vpop.f32.mrb[0].mxu0
        %2114 = vdwg.mxu0
        %2115 = vmatprep.subr.bf16.mxu0 %v1465
        %2116 = vmatpush1.bf16.msra.mxu0 %v1464
        %2117 = vmatprep.subr.bf16.mxu0 %v1469
        %2118 = vmatpush1.bf16.msra.mxu0 %v1468
        %2119 = vmatprep.subr.bf16.mxu0 %v1473
        %2120 = vmatpush1.bf16.msra.mxu0 %v1472
        %2121 = vmatprep.subr.bf16.mxu0 %v1477
        %2122 = vmatpush1.bf16.msra.mxu0 %v1476
        %2123 = vmatprep.subr.bf16.mxu0 %v1481
        %2124 = vmatpush1.bf16.msra.mxu0 %v1480
        %2125 = vmatprep.subr.bf16.mxu0 %v1485
        %2126 = vmatpush1.bf16.msra.mxu0 %v1484
        %2127 = vmatprep.subr.bf16.mxu0 %v1489
        %2128 = vmatpush1.bf16.msra.mxu0 %v1488
        %2129 = vmatprep.subr.bf16.mxu0 %v1493
        %2130 = vmatpush1.bf16.msra.mxu0 %v1492
        %2131 = vmatprep.subr.bf16.mxu0 %v1497
        %2132 = vmatpush1.bf16.msra.mxu0 %v1496
        %2133 = vmatprep.subr.bf16.mxu0 %v1501
        %2134 = vmatpush1.bf16.msra.mxu0 %v1500
        %2135 = vmatprep.subr.bf16.mxu0 %v1505
        %2136 = vmatpush1.bf16.msra.mxu0 %v1504
        %2137 = vmatprep.subr.bf16.mxu0 %v1509
        %2138 = vmatpush1.bf16.msra.mxu0 %v1508
        %2139 = vmatprep.subr.bf16.mxu0 %v1513
        %2140 = vmatpush1.bf16.msra.mxu0 %v1512
        %2141 = vmatprep.subr.bf16.mxu0 %v1517
        %2142 = vmatpush1.bf16.msra.mxu0 %v1516
        %2143 = vmatprep.subr.bf16.mxu0 %v1521
        %2144 = vmatpush1.bf16.msra.mxu0 %v1520
        %2145 = vmatprep.subr.bf16.mxu0 %v1525
        %2146 = vmatpush1.bf16.msra.mxu0 %v1524
        %2147 = vmatprep.mubr.bf16.mxu0 %v617
        %2148 = vmatmul.mubr.bf16.gmra.mrb[0].mxu0 %v616
        %v2149 = vpop.f32.mrb[0].mxu0
        %v2150 = vadd.f32 %v2109, %v2149
        %v2151 = vpop.f32.mrb[0].mxu0
        %v2152 = vadd.f32 %v2111, %v2151
        %v2153 = vpop.f32.mrb[0].mxu0
        %v2154 = vpop.f32.mrb[0].mxu0
        %2155 = vdwg.mxu0
        %2156 = vmatprep.subr.bf16.mxu0 %v1529
        %2157 = vmatpush1.bf16.msra.mxu0 %v1528
        %2158 = vmatprep.subr.bf16.mxu0 %v1533
        %2159 = vmatpush1.bf16.msra.mxu0 %v1532
        %2160 = vmatprep.subr.bf16.mxu0 %v1537
        %2161 = vmatpush1.bf16.msra.mxu0 %v1536
        %2162 = vmatprep.subr.bf16.mxu0 %v1541
        %2163 = vmatpush1.bf16.msra.mxu0 %v1540
        %2164 = vmatprep.subr.bf16.mxu0 %v1545
        %2165 = vmatpush1.bf16.msra.mxu0 %v1544
        %2166 = vmatprep.subr.bf16.mxu0 %v1549
        %2167 = vmatpush1.bf16.msra.mxu0 %v1548
        %2168 = vmatprep.subr.bf16.mxu0 %v1553
        %2169 = vmatpush1.bf16.msra.mxu0 %v1552
        %2170 = vmatprep.subr.bf16.mxu0 %v1557
        %2171 = vmatpush1.bf16.msra.mxu0 %v1556
        %2172 = vmatprep.subr.bf16.mxu0 %v1561
        %2173 = vmatpush1.bf16.msra.mxu0 %v1560
        %2174 = vmatprep.subr.bf16.mxu0 %v1565
        %2175 = vmatpush1.bf16.msra.mxu0 %v1564
        %2176 = vmatprep.subr.bf16.mxu0 %v1569
        %2177 = vmatpush1.bf16.msra.mxu0 %v1568
        %2178 = vmatprep.subr.bf16.mxu0 %v1573
        %2179 = vmatpush1.bf16.msra.mxu0 %v1572
        %2180 = vmatprep.subr.bf16.mxu0 %v1577
        %2181 = vmatpush1.bf16.msra.mxu0 %v1576
        %2182 = vmatprep.subr.bf16.mxu0 %v1581
        %2183 = vmatpush1.bf16.msra.mxu0 %v1580
        %2184 = vmatprep.subr.bf16.mxu0 %v1585
        %2185 = vmatpush1.bf16.msra.mxu0 %v1584
        %2186 = vmatprep.subr.bf16.mxu0 %v1589
        %2187 = vmatpush1.bf16.msra.mxu0 %v1588
        %2188 = vmatprep.mubr.bf16.mxu0 %v619
        %2189 = vmatmul.mubr.bf16.gmra.mrb[0].mxu0 %v618
        %v2190 = vpop.f32.mrb[0].mxu0
        %v2191 = vadd.f32 %v2150, %v2190
        %v2192 = vpop.f32.mrb[0].mxu0
        %v2193 = vadd.f32 %v2152, %v2192
        %v2194 = vpop.f32.mrb[0].mxu0
        %v2195 = vpop.f32.mrb[0].mxu0
        %2196 = vdwg.mxu0
        %2197 = vmatprep.subr.bf16.mxu0 %v1593
        %2198 = vmatpush1.bf16.msra.mxu0 %v1592
        %2199 = vmatprep.subr.bf16.mxu0 %v1597
        %2200 = vmatpush1.bf16.msra.mxu0 %v1596
        %2201 = vmatprep.subr.bf16.mxu0 %v1601
        %2202 = vmatpush1.bf16.msra.mxu0 %v1600
        %2203 = vmatprep.subr.bf16.mxu0 %v1605
        %2204 = vmatpush1.bf16.msra.mxu0 %v1604
        %2205 = vmatprep.subr.bf16.mxu0 %v1609
        %2206 = vmatpush1.bf16.msra.mxu0 %v1608
        %2207 = vmatprep.subr.bf16.mxu0 %v1613
        %2208 = vmatpush1.bf16.msra.mxu0 %v1612
        %2209 = vmatprep.subr.bf16.mxu0 %v1617
        %2210 = vmatpush1.bf16.msra.mxu0 %v1616
        %2211 = vmatprep.subr.bf16.mxu0 %v1621
        %2212 = vmatpush1.bf16.msra.mxu0 %v1620
        %2213 = vmatprep.subr.bf16.mxu0 %v1625
        %2214 = vmatpush1.bf16.msra.mxu0 %v1624
        %2215 = vmatprep.subr.bf16.mxu0 %v1629
        %2216 = vmatpush1.bf16.msra.mxu0 %v1628
        %2217 = vmatprep.subr.bf16.mxu0 %v1633
        %2218 = vmatpush1.bf16.msra.mxu0 %v1632
        %2219 = vmatprep.subr.bf16.mxu0 %v1637
        %2220 = vmatpush1.bf16.msra.mxu0 %v1636
        %2221 = vmatprep.subr.bf16.mxu0 %v1641
        %2222 = vmatpush1.bf16.msra.mxu0 %v1640
        %2223 = vmatprep.subr.bf16.mxu0 %v1645
        %2224 = vmatpush1.bf16.msra.mxu0 %v1644
        %2225 = vmatprep.subr.bf16.mxu0 %v1649
        %2226 = vmatpush1.bf16.msra.mxu0 %v1648
        %2227 = vmatprep.subr.bf16.mxu0 %v1653
        %2228 = vmatpush1.bf16.msra.mxu0 %v1652
        %2229 = vmatprep.mubr.bf16.mxu0 %v621
        %2230 = vmatmul.mubr.bf16.gmra.mrb[0].mxu0 %v620
        %v2231 = vpop.f32.mrb[0].mxu0
        %v2232 = vadd.f32 %v2191, %v2231
        %v2233 = vpop.f32.mrb[0].mxu0
        %v2234 = vadd.f32 %v2193, %v2233
        %v2235 = vpop.f32.mrb[0].mxu0
        %v2236 = vpop.f32.mrb[0].mxu0
        %2237 = vdwg.mxu0
        %v2238 = vmul.f32 %v2068, %v345
        %v2239 = vmul.f32 %v2070, %v345
        %v2240 = vmul.f32 %v2232, %v345
        %v2241 = vmul.f32 %v2234, %v345
        %v2242 = vld [vmem:[%s2] sm:$0xf]
        %v2244 = vlaneseq
        %v2245 = vshrl.u32 %v2244, 7
        %v2246 = vsub.s32 0, %v2245
        %v2247 = vrot.slane %v2242, %v2246
        %v2248 = vlaneseq
        %v2249 = vshrl.u32 %v2248, 7
        %v2250 = vsub.s32 1, %v2249
        %v2251 = vrot.slane %v2242, %v2250
        %v2252 = vlaneseq
        %v2253 = vshrl.u32 %v2252, 7
        %v2254 = vsub.s32 2, %v2253
        %v2255 = vrot.slane %v2242, %v2254
        %v2256 = vlaneseq
        %v2257 = vshrl.u32 %v2256, 7
        %v2258 = vsub.s32 3, %v2257
        %v2259 = vrot.slane %v2242, %v2258
        %v2264 = vadd.f32 %v2238, %v2247
        %v2265 = vadd.f32 %v2239, %v2251
        %v2266 = vadd.f32 %v2240, %v2255
        %v2267 = vadd.f32 %v2241, %v2259
        %v2268 = vpack.c.bf16 %v2264, %v2264
        %v2269 = vpack.c.bf16 %v2265, %v2265
        %v2270 = vpack.c.bf16 %v2266, %v2266
        %v2271 = vpack.c.bf16 %v2267, %v2267
        %v2272 = vld [vmem:[#allocation7] sm:$0xff]
        %v2273 = vld [vmem:[#allocation7 + $0x8] sm:$0xff]
        %v2274 = vld [vmem:[#allocation7 + $0x10] sm:$0xff]
        %v2275 = vld [vmem:[#allocation7 + $0x18] sm:$0xff]
        %v2276 = vld [vmem:[%s5] sm:$0x1]
        %v2278 = vlaneseq
        %v2279 = vshrl.u32 %v2278, 7
        %v2280 = vsub.s32 0, %v2279
        %v2281 = vrot.slane %v2276, %v2280
        %v2287 = vunpack.c.l.b16 %v2272
        %v2288 = vunpack.c.h.b16 %v2272
        %v2289 = vunpack.c.l.b16 %v2273
        %v2290 = vunpack.c.h.b16 %v2273
        %v2291 = vunpack.c.l.b16 %v2274
        %v2292 = vunpack.c.h.b16 %v2274
        %v2293 = vunpack.c.l.b16 %v2275
        %v2294 = vunpack.c.h.b16 %v2275
        %v2295 = vpack.c.b16 %v2291, %v2287
        %v2296 = vpack.c.b16 %v2292, %v2288
        %v2297 = vpack.c.b16 %v2293, %v2289
        %v2298 = vpack.c.b16 %v2294, %v2290
        %2303 = vmatprep.subr.bf16.mxu0 %v2296
        %2304 = vmatpush1.bf16.xpose.msra.mxu0 %v2295
        %2305 = vmatprep.subr.bf16.mxu0 0
        %2306 = vmatpush1.bf16.xpose.msra.mxu0 0
        %2307 = vmatprep.subr.bf16.mxu0 0
        %2308 = vmatpush1.bf16.xpose.msra.mxu0 0
        %2309 = vmatprep.subr.bf16.mxu0 0
        %2310 = vmatpush1.bf16.xpose.msra.mxu0 0
        %2311 = vmatprep.subr.bf16.mxu0 0
        %2312 = vmatpush1.bf16.xpose.msra.mxu0 0
        %2313 = vmatprep.subr.bf16.mxu0 0
        %2314 = vmatpush1.bf16.xpose.msra.mxu0 0
        %2315 = vmatprep.subr.bf16.mxu0 0
        %2316 = vmatpush1.bf16.xpose.msra.mxu0 0
        %2317 = vmatprep.subr.bf16.mxu0 0
        %2318 = vmatpush1.bf16.xpose.msra.mxu0 0
        %2319 = vmatprep.subr.bf16.mxu0 0
        %2320 = vmatpush1.bf16.xpose.msra.mxu0 0
        %2321 = vmatprep.subr.bf16.mxu0 0
        %2322 = vmatpush1.bf16.xpose.msra.mxu0 0
        %2323 = vmatprep.subr.bf16.mxu0 0
        %2324 = vmatpush1.bf16.xpose.msra.mxu0 0
        %2325 = vmatprep.subr.bf16.mxu0 0
        %2326 = vmatpush1.bf16.xpose.msra.mxu0 0
        %2327 = vmatprep.subr.bf16.mxu0 0
        %2328 = vmatpush1.bf16.xpose.msra.mxu0 0
        %2329 = vmatprep.subr.bf16.mxu0 0
        %2330 = vmatpush1.bf16.xpose.msra.mxu0 0
        %2331 = vmatprep.subr.bf16.mxu0 0
        %2332 = vmatpush1.bf16.xpose.msra.mxu0 0
        %2333 = vmatprep.subr.bf16.mxu0 0
        %2334 = vmatpush1.bf16.xpose.msra.mxu0 0
        %2335 = vmatprep.mubr.bf16.mxu0 %v2269
        %2336 = vmatmul.mubr.bf16.gmra.mrb[0].mxu0 %v2268
        %v2337 = vpop.f32.mrb[0].mxu0
        %v2338 = vadd.f32 %v2281, %v2337
        %v2339 = vpop.f32.mrb[0].mxu0
        %v2340 = vpop.f32.mrb[0].mxu0
        %v2341 = vpop.f32.mrb[0].mxu0
        %2342 = vdwg.mxu0
        %2343 = vmatprep.subr.bf16.mxu0 %v2298
        %2344 = vmatpush1.bf16.xpose.msra.mxu0 %v2297
        %2345 = vmatprep.subr.bf16.mxu0 0
        %2346 = vmatpush1.bf16.xpose.msra.mxu0 0
        %2347 = vmatprep.subr.bf16.mxu0 0
        %2348 = vmatpush1.bf16.xpose.msra.mxu0 0
        %2349 = vmatprep.subr.bf16.mxu0 0
        %2350 = vmatpush1.bf16.xpose.msra.mxu0 0
        %2351 = vmatprep.subr.bf16.mxu0 0
        %2352 = vmatpush1.bf16.xpose.msra.mxu0 0
        %2353 = vmatprep.subr.bf16.mxu0 0
        %2354 = vmatpush1.bf16.xpose.msra.mxu0 0
        %2355 = vmatprep.subr.bf16.mxu0 0
        %2356 = vmatpush1.bf16.xpose.msra.mxu0 0
        %2357 = vmatprep.subr.bf16.mxu0 0
        %2358 = vmatpush1.bf16.xpose.msra.mxu0 0
        %2359 = vmatprep.subr.bf16.mxu0 0
        %2360 = vmatpush1.bf16.xpose.msra.mxu0 0
        %2361 = vmatprep.subr.bf16.mxu0 0
        %2362 = vmatpush1.bf16.xpose.msra.mxu0 0
        %2363 = vmatprep.subr.bf16.mxu0 0
        %2364 = vmatpush1.bf16.xpose.msra.mxu0 0
        %2365 = vmatprep.subr.bf16.mxu0 0
        %2366 = vmatpush1.bf16.xpose.msra.mxu0 0
        %2367 = vmatprep.subr.bf16.mxu0 0
        %2368 = vmatpush1.bf16.xpose.msra.mxu0 0
        %2369 = vmatprep.subr.bf16.mxu0 0
        %2370 = vmatpush1.bf16.xpose.msra.mxu0 0
        %2371 = vmatprep.subr.bf16.mxu0 0
        %2372 = vmatpush1.bf16.xpose.msra.mxu0 0
        %2373 = vmatprep.subr.bf16.mxu0 0
        %2374 = vmatpush1.bf16.xpose.msra.mxu0 0
        %2375 = vmatprep.mubr.bf16.mxu0 %v2271
        %2376 = vmatmul.mubr.bf16.gmra.mrb[0].mxu0 %v2270
        %v2377 = vpop.f32.mrb[0].mxu0
        %v2378 = vadd.f32 %v2338, %v2377
        %v2379 = vpop.f32.mrb[0].mxu0
        %v2380 = vpop.f32.mrb[0].mxu0
        %v2381 = vpop.f32.mrb[0].mxu0
        %2382 = vdwg.mxu0
        %vm2383 = vcmask 130048
        %v2384 = vsel %vm2383, %v2378, -inf
        %2385 = vmax.xlane.f32.xlu0 %v2384
        %v2386 = vpop.xlane.xlu0 %2385
        %v2387 = vsub.f32 %v2378, %v2386
        %v2388 = vmul.f32 %v2387, 1.442695
        %v2389 = vpow.pop %v2388
        %v2390 = vsel %vm2383, %v2389, 0.0
        %2391 = vadd.xlane.f32.xlu0 %v2390
        %v2392 = vpop.xlane.xlu0 %2391
        %v2393 = vrcp.pop %v2392
        %v2394 = vmul.f32 %v2389, %v2393
        %v2395 = vsel %vm2383, %v2394, 0.0
        %v2396 = vrot.slane %v2395, 4
        %v2397 = vadd.f32 %v2395, %v2396
        %v2398 = vrot.slane %v2397, 2
        %v2399 = vadd.f32 %v2397, %v2398
        %v2400 = vrot.slane %v2399, 1
        %v2401 = vadd.f32 %v2399, %v2400
        %v2402 = vpack.c.bf16 %v2394, %v2394
        %2403 = vxpose.xlu0.c.b16.start [1/8] %v2402, 128
        %2404 = vxpose.xlu0.c.b16.cont [2/8] 0, 128
        %2405 = vxpose.xlu0.c.b16.cont [3/8] 0, 128
        %2406 = vxpose.xlu0.c.b16.cont [4/8] 0, 128
        %2407 = vxpose.xlu0.c.b16.cont [5/8] 0, 128
        %2408 = vxpose.xlu0.c.b16.cont [6/8] 0, 128
        %2409 = vxpose.xlu0.c.b16.cont [7/8] 0, 128
        %2410 = vxpose.xlu0.c.b16.end [8/8] 0, 128
        %v2411 = vpop.trf.xlu0
        %v2412 = vpop.trf.xlu0
        %v2413 = vpop.trf.xlu0
        %v2414 = vpop.trf.xlu0
        %v2415 = vpop.trf.xlu0
        %v2416 = vpop.trf.xlu0
        %v2417 = vpop.trf.xlu0
        %v2418 = vpop.trf.xlu0
        %vm2419 = vcmask 64512
        %v2421 = vsel %vm2419, %v2411, 0
        %vm2423 = vcmask 1043456
        %v2425 = vsel %vm2423, %v2268, 0
        %v2428 = vsel %vm2423, %v2269, 0
        %v2431 = vsel %vm2423, %v2270, 0
        %v2434 = vsel %vm2423, %v2271, 0
        %2436 = vmatprep.subr.bf16.mxu0 %v2428
        %2437 = vmatpush1.bf16.msra.mxu0 %v2425
        %2438 = vmatprep.subr.bf16.mxu0 0
        %2439 = vmatpush1.bf16.msra.mxu0 0
        %2440 = vmatprep.subr.bf16.mxu0 0
        %2441 = vmatpush1.bf16.msra.mxu0 0
        %2442 = vmatprep.subr.bf16.mxu0 0
        %2443 = vmatpush1.bf16.msra.mxu0 0
        %2444 = vmatprep.subr.bf16.mxu0 0
        %2445 = vmatpush1.bf16.msra.mxu0 0
        %2446 = vmatprep.subr.bf16.mxu0 0
        %2447 = vmatpush1.bf16.msra.mxu0 0
        %2448 = vmatprep.subr.bf16.mxu0 0
        %2449 = vmatpush1.bf16.msra.mxu0 0
        %2450 = vmatprep.subr.bf16.mxu0 0
        %2451 = vmatpush1.bf16.msra.mxu0 0
        %2452 = vmatprep.subr.bf16.mxu0 0
        %2453 = vmatpush1.bf16.msra.mxu0 0
        %2454 = vmatprep.subr.bf16.mxu0 0
        %2455 = vmatpush1.bf16.msra.mxu0 0
        %2456 = vmatprep.subr.bf16.mxu0 0
        %2457 = vmatpush1.bf16.msra.mxu0 0
        %2458 = vmatprep.subr.bf16.mxu0 0
        %2459 = vmatpush1.bf16.msra.mxu0 0
        %2460 = vmatprep.subr.bf16.mxu0 0
        %2461 = vmatpush1.bf16.msra.mxu0 0
        %2462 = vmatprep.subr.bf16.mxu0 0
        %2463 = vmatpush1.bf16.msra.mxu0 0
        %2464 = vmatprep.subr.bf16.mxu0 0
        %2465 = vmatpush1.bf16.msra.mxu0 0
        %2466 = vmatprep.subr.bf16.mxu0 0
        %2467 = vmatpush1.bf16.msra.mxu0 0
        %2468 = vmatprep.mubr.bf16.mxu0 0
        %2469 = vmatmul.mubr.bf16.gmra.mrb[0].mxu0 %v2421
        %v2470 = vpop.f32.mrb[0].mxu0
        %v2471 = vadd.f32 0.0, %v2470
        %v2472 = vpop.f32.mrb[0].mxu0
        %v2473 = vadd.f32 0.0, %v2472
        %v2474 = vpop.f32.mrb[0].mxu0
        %v2475 = vadd.f32 0.0, %v2474
        %v2476 = vpop.f32.mrb[0].mxu0
        %v2477 = vadd.f32 0.0, %v2476
        %2478 = vdwg.mxu0
        %2479 = vmatprep.subr.bf16.mxu0 %v2434
        %2480 = vmatpush1.bf16.msra.mxu0 %v2431
        %2481 = vmatprep.subr.bf16.mxu0 0
        %2482 = vmatpush1.bf16.msra.mxu0 0
        %2483 = vmatprep.subr.bf16.mxu0 0
        %2484 = vmatpush1.bf16.msra.mxu0 0
        %2485 = vmatprep.subr.bf16.mxu0 0
        %2486 = vmatpush1.bf16.msra.mxu0 0
        %2487 = vmatprep.subr.bf16.mxu0 0
        %2488 = vmatpush1.bf16.msra.mxu0 0
        %2489 = vmatprep.subr.bf16.mxu0 0
        %2490 = vmatpush1.bf16.msra.mxu0 0
        %2491 = vmatprep.subr.bf16.mxu0 0
        %2492 = vmatpush1.bf16.msra.mxu0 0
        %2493 = vmatprep.subr.bf16.mxu0 0
        %2494 = vmatpush1.bf16.msra.mxu0 0
        %2495 = vmatprep.subr.bf16.mxu0 0
        %2496 = vmatpush1.bf16.msra.mxu0 0
        %2497 = vmatprep.subr.bf16.mxu0 0
        %2498 = vmatpush1.bf16.msra.mxu0 0
        %2499 = vmatprep.subr.bf16.mxu0 0
        %2500 = vmatpush1.bf16.msra.mxu0 0
        %2501 = vmatprep.subr.bf16.mxu0 0
        %2502 = vmatpush1.bf16.msra.mxu0 0
        %2503 = vmatprep.subr.bf16.mxu0 0
        %2504 = vmatpush1.bf16.msra.mxu0 0
        %2505 = vmatprep.subr.bf16.mxu0 0
        %2506 = vmatpush1.bf16.msra.mxu0 0
        %2507 = vmatprep.subr.bf16.mxu0 0
        %2508 = vmatpush1.bf16.msra.mxu0 0
        %2509 = vmatprep.subr.bf16.mxu0 0
        %2510 = vmatpush1.bf16.msra.mxu0 0
        %2511 = vmatprep.mubr.bf16.mxu0 0
        %2512 = vmatmul.mubr.bf16.gmra.mrb[0].mxu0 %v2421
        %v2513 = vpop.f32.mrb[0].mxu0
        %v2514 = vadd.f32 0.0, %v2513
        %v2515 = vpop.f32.mrb[0].mxu0
        %v2516 = vadd.f32 0.0, %v2515
        %v2517 = vpop.f32.mrb[0].mxu0
        %v2518 = vadd.f32 0.0, %v2517
        %v2519 = vpop.f32.mrb[0].mxu0
        %v2520 = vadd.f32 0.0, %v2519
        %2521 = vdwg.mxu0
        %2523 = vbcast.lane.b32.xlu0 %v2401, 256
        %v2524 = vpop.permute.xlu0 %2523
        %s2526 = sor.u32 256, 8
        %2527 = vbcast.lane.b32.xlu0 %v2401, %s2526
        %v2528 = vpop.permute.xlu0 %2527
        %v2529 = vld [vmem:[#allocation6] sm:$0xff]
        %v2530 = vld [vmem:[#allocation6 + $0x8] sm:$0xff]
        %v2531 = vld [vmem:[#allocation6 + $0x10] sm:$0xff]
        %v2532 = vld [vmem:[#allocation6 + $0x18] sm:$0xff]
        %v2533 = vld [vmem:[#allocation6 + $0x20] sm:$0xff]
        %v2534 = vld [vmem:[#allocation6 + $0x28] sm:$0xff]
        %v2535 = vld [vmem:[#allocation6 + $0x30] sm:$0xff]
        %v2536 = vld [vmem:[#allocation6 + $0x38] sm:$0xff]
        %v2537 = vmul.f32 %v2524, %v2529
        %v2538 = vmul.f32 %v2524, %v2530
        %v2539 = vmul.f32 %v2524, %v2531
        %v2540 = vmul.f32 %v2524, %v2532
        %v2541 = vmul.f32 %v2528, %v2533
        %v2542 = vmul.f32 %v2528, %v2534
        %v2543 = vmul.f32 %v2528, %v2535
        %v2544 = vmul.f32 %v2528, %v2536
        %v2545 = vsub.f32 %v2471, %v2537
        %v2546 = vsub.f32 %v2473, %v2538
        %v2547 = vsub.f32 %v2514, %v2539
        %v2548 = vsub.f32 %v2516, %v2540
        %v2549 = vsub.f32 %v2475, %v2541
        %v2550 = vsub.f32 %v2477, %v2542
        %v2551 = vsub.f32 %v2518, %v2543
        %v2552 = vsub.f32 %v2520, %v2544
        %v2553 = vmul.f32 %v2545, %v2545
        %v2554 = vmul.f32 %v2546, %v2546
        %v2555 = vmul.f32 %v2547, %v2547
        %v2556 = vmul.f32 %v2548, %v2548
        %v2557 = vmul.f32 %v2549, %v2549
        %v2558 = vmul.f32 %v2550, %v2550
        %v2559 = vmul.f32 %v2551, %v2551
        %v2560 = vmul.f32 %v2552, %v2552
        %v2561 = vadd.f32 %v2553, %v2554
        %v2562 = vadd.f32 %v2561, %v2555
        %v2563 = vadd.f32 %v2562, %v2556
        %2564 = vadd.xlane.f32.xlu0 %v2563
        %v2565 = vpop.xlane.xlu0 %2564
        %v2566 = vadd.f32 %v2557, %v2558
        %v2567 = vadd.f32 %v2566, %v2559
        %v2568 = vadd.f32 %v2567, %v2560
        %2569 = vadd.xlane.f32.xlu0 %v2568
        %v2570 = vpop.xlane.xlu0 %2569
        %v2571 = vmax.f32 %v2565, 1e-24
        %v2572 = vmax.f32 %v2570, 1e-24
        %v2573 = vrsqrt.pop %v2571
        %v2574 = vrsqrt.pop %v2572
        %v2575 = vmul.f32 %v2545, %v2573
        %v2576 = vmul.f32 %v2546, %v2573
        %v2577 = vmul.f32 %v2547, %v2573
        %v2578 = vmul.f32 %v2548, %v2573
        %v2579 = vmul.f32 %v2549, %v2574
        %v2580 = vmul.f32 %v2550, %v2574
        %v2581 = vmul.f32 %v2551, %v2574
        %v2582 = vmul.f32 %v2552, %v2574
        %2583 = vst [vmem:[%s313] sm:$0xff] %v2575
        %2584 = vst [vmem:[%s313 + $0x8] sm:$0xff] %v2576
        %2585 = vst [vmem:[%s313 + $0x10] sm:$0xff] %v2577
        %2586 = vst [vmem:[%s313 + $0x18] sm:$0xff] %v2578
        %2587 = vst [vmem:[%s313 + $0x20] sm:$0x1] %v2579
        %2588 = vst [vmem:[%s313 + $0x28] sm:$0x1] %v2580
        %2589 = vst [vmem:[%s313 + $0x30] sm:$0x1] %v2581
        %2590 = vst [vmem:[%s313 + $0x38] sm:$0x1] %v2582
        %v2595 = vrot.slane %v2264, 7
        %v2596 = vrot.slane %v2265, 7
        %v2597 = vrot.slane %v2266, 7
        %v2598 = vrot.slane %v2267, 7
        %2603 = vst [vmem:[%s313 + $0x20] sm:$0xfe] %v2595
        %2604 = vst [vmem:[%s313 + $0x28] sm:$0xfe] %v2596
        %2605 = vst [vmem:[%s313 + $0x30] sm:$0xfe] %v2597
        %2606 = vst [vmem:[%s313 + $0x38] sm:$0xfe] %v2598
        %2607 = vst [vmem:[%s313 + $0x40] sm:$0x1] %v2595
        %2608 = vst [vmem:[%s313 + $0x48] sm:$0x1] %v2596
        %2609 = vst [vmem:[%s313 + $0x50] sm:$0x1] %v2597
        %2610 = vst [vmem:[%s313 + $0x58] sm:$0x1] %v2598
        %p2611 = scmp.lt.s32.totalorder %s22, 1
        %s2612 = scalar_select %p2611, %s22, 1
        %s2613 = smul.addr %s2612, 12
        %s2614 = smul.addr %s2613, 8
        %s2615 = scalar_lea.vmem %s6, %s2614
        // Predicated region
        $region61: #{tpu_custom_call.1} parent=43 // pred_check
          %p2616 = pneg %p171
        $region62: #{tpu_custom_call.1} parent=43 // pred_check_branch
          %2618 = sbr.rel (%p2616) target = $region64
        $region63: #{tpu_custom_call.1} parent=43 // pred_region
          _
        $region64: #{tpu_custom_call.1} parent=43 // pred_fallthru
          _
      $region44: #{tpu_custom_call.1} parent=5 // pred_fallthru
        _
      %p2619 = scmp.le.s32.totalorder 2, %s17
      // Predicated region
      $region65: #{tpu_custom_call.1} parent=5 // pred_check
        %p2620 = pneg %p2619
      $region66: #{tpu_custom_call.1} parent=5 // pred_check_branch
        %2622 = sbr.rel (%p2620) target = $region68
      $region67: #{tpu_custom_call.1} parent=5 // pred_region
        %s2623 = ssub.s32 %s17, 2
        // Predicated region
        $region69: #{tpu_custom_call.1} parent=67 // pred_check
          %p2624 = pneg %p177
        $region70: #{tpu_custom_call.1} parent=67 // pred_check_branch
          %2626 = sbr.rel (%p2624) target = $region72
        $region71: #{tpu_custom_call.1} parent=67 // pred_region
          %p2627 = scmp.lt.s32.totalorder %s23, 1
          %s2628 = scalar_select %p2627, %s23, 1
          %s2629 = smul.addr %s2628, 12
          %s2630 = smul.addr %s2629, 8
          %s2631 = scalar_lea.vmem %s6, %s2630
        $region72: #{tpu_custom_call.1} parent=67 // pred_fallthru
          _
      $region68: #{tpu_custom_call.1} parent=5 // pred_fallthru
        _
    $region6: #{tpu_custom_call.1} parent=1 // loop_footer
      %s21 = sadd.s32 1, %s17
    $region7: #{tpu_custom_call.1} parent=1 // loop_footer_branch
      %16 = sbr.rel target = $region3
    $region8: #{tpu_custom_call.1} parent=1 // loop_exit
      _
    %2632 = vsyncpa [#allocation3], 1
    %s2633 = scalar_lea.sflag [#allocation3], 1
    %2634 = vsyncpa %s2633, 1
    %2635 = vsyncpa [#allocation5], 1
    %2636 = vsyncpa [#allocation8], 1

</llo_original>
